<compile_context>
chip_gen: v7x
topology: tpu7x:2x2x1
jax: 0.10.0
libtpu: 0.0.40
codegen_flags: <defaults>
</compile_context>

<pallas_src>
import math

import jax
import jax.numpy as jnp
from jax.experimental import pallas as pl
from jax.experimental.pallas import tpu as pltpu

EPS = 1e-5  # nn.BatchNorm2d default eps


def _bn_relu(y, gamma, beta):
    """Training-mode BatchNorm (biased batch stats over rows) + ReLU.
    Two-pass variance; conv bias is exactly cancelled by the mean subtraction."""
    m = jnp.mean(y, axis=0, keepdims=True)
    d = y - m
    var = jnp.mean(d * d, axis=0, keepdims=True)
    scale = gamma * jax.lax.rsqrt(var + EPS)
    return jnp.maximum(d * scale + beta, 0.0)


# ----------------------------------------------------------------------------
# Fused kernel: conv1 (as 3x3 over space-to-depth, 1 matmul) + BN + ReLU
#               + maxpool2 + conv2 (3x3/p1, 1 matmul) + BN + ReLU + avgpool2
# ----------------------------------------------------------------------------
def _make_kernel(B, OH1, OW1, CS, C1, C2):
    PH, PW = OH1 // 2, OW1 // 2           # spatial after max-pool
    M1 = B * OH1 * OW1
    M2 = B * PH * PW

    def kernel(xs_ref, w_ref, bn_ref, out_ref, ypad_ref):
        bn = bn_ref[...]                                           # (4, 16)

        # ---- stage 1: 9 static tap slices -> one (M1, 9*CS) patch matrix
        #      -> ONE MXU matmul + BN + ReLU ----
        taps1 = [xs_ref[:, ky:ky + OH1, kx:kx + OW1, :].reshape(M1, CS)
                 for ky in range(3) for kx in range(3)]
        y1 = jnp.dot(jnp.concatenate(taps1, axis=-1), w_ref[0],
                     preferred_element_type=jnp.float32)           # (M1, C1)
        y1 = _bn_relu(y1, bn[0:1], bn[1:2])

        # ---- 2x2 max-pool (reshape-reduce) ----
        y1 = jnp.max(y1.reshape(B, PH, 2, OW1, C1), axis=2)
        y1p = jnp.max(y1.reshape(B, PH, PW, 2, C1), axis=3)        # (B,PH,PW,C1)

        # ---- stage 2: zero-padded activation staged once in VMEM, 9 taps
        #      gathered into one (M2, 9*C1) patch matrix -> ONE matmul ----
        ypad_ref[...] = jnp.zeros(ypad_ref.shape, ypad_ref.dtype)
        ypad_ref[:, 1:PH + 1, 1:PW + 1, :] = y1p
        taps2 = [ypad_ref[:, ky:ky + PH, kx:kx + PW, :].reshape(M2, C1)
                 for ky in range(3) for kx in range(3)]
        y2 = jnp.dot(jnp.concatenate(taps2, axis=-1), w_ref[1],
                     preferred_element_type=jnp.float32)           # (M2, C2)
        y2 = _bn_relu(y2, bn[2:3], bn[3:4])

        # ---- 2x2 avg-pool, store flat (B*2*2, C2) NHWC ----
        y2 = jnp.mean(y2.reshape(B, PH // 2, 2, PW, C2), axis=2)
        y2 = jnp.mean(y2.reshape(B, PH // 2, PW // 2, 2, C2), axis=3)
        out_ref[...] = y2.reshape(B * (PH // 2) * (PW // 2), C2)

    return kernel


# ----------------------------------------------------------------------------
# Parameter init (deterministic, mirrors ShallowNet.__init__)
# ----------------------------------------------------------------------------
def init_params(key, input_dim=4, output_dim=16):
    k1, k2 = jax.random.split(key)
    s1 = math.sqrt(2.0 / (16 * 5 * 5))
    s2 = math.sqrt(2.0 / (output_dim * 3 * 3))
    return dict(
        w1=jax.random.uniform(k1, (16, input_dim, 5, 5), jnp.float32, -s1, s1),
        b1=jnp.zeros((16,), jnp.float32),        # kept for interface parity;
        g1=jnp.ones((16,), jnp.float32),         # bias is exactly cancelled by
        be1=jnp.zeros((16,), jnp.float32),       # training-mode BN.
        w2=jax.random.uniform(k2, (output_dim, 16, 3, 3), jnp.float32, -s2, s2),
        b2=jnp.zeros((output_dim,), jnp.float32),
        g2=jnp.ones((output_dim,), jnp.float32),
        be2=jnp.zeros((output_dim,), jnp.float32),
    )


# ----------------------------------------------------------------------------
# One-time weight / BN repacking (kept OUT of the per-call path)
# ----------------------------------------------------------------------------
def prepare_params(params):
    w1, w2 = params["w1"], params["w2"]          # (16,Cin,5,5), (Cout,16,3,3)
    co1, cin = w1.shape[0], w1.shape[1]
    co2, c1 = w2.shape[0], w2.shape[1]
    # TODO(synk): generalize the single packed-weight operand beyond
    # input_dim=4 / output_dim=16 (module defaults) by padding K/N.
    assert 4 * cin == 9 * c1 // 9 * 1 + 0 or True
    assert 9 * 4 * cin == 9 * c1 and co1 == co2, \
        "packed operand path assumes input_dim=4, output_dim=16"

    # conv1 (5x5, stride 2) re-expressed as a 3x3/s1 conv over the
    # space-to-depth input; s2d channel index = (di*2+dj)*cin + c.
    w1p = jnp.pad(w1, ((0, 0), (0, 0), (0, 1), (0, 1)))            # 5x5 -> 6x6
    w1e = (w1p.reshape(co1, cin, 3, 2, 3, 2)                       # co,c,a,di,b,dj
               .transpose(2, 4, 3, 5, 1, 0)                        # a,b,di,dj,c,co
               .reshape(9 * 4 * cin, co1))                         # (144, 16)
    # conv2 (3x3) im2col weights, tap order t = 3*ky + kx, row = t*16 + ci.
    w2e = jnp.transpose(w2, (2, 3, 1, 0)).reshape(9 * c1, co2)     # (144, 16)

    wboth = jnp.stack([w1e, w2e], axis=0)                          # (2,144,16)
    bn = jnp.stack([params["g1"], params["be1"],
                    params["g2"], params["be2"]], axis=0)          # (4, 16)
    return dict(w=wboth, bn=bn)


# ----------------------------------------------------------------------------
# Forward pass: tiny prep fusion -> one fused pallas_call -> NHWC->NCHW
# ----------------------------------------------------------------------------
@jax.jit
def shallow_net_forward(x_nchw, prepared):
    B, cin, H, W = x_nchw.shape
    assert H % 4 == 0 and W % 4 == 0
    OH1, OW1 = H // 2, W // 2
    PH, PW = OH1 // 2, OW1 // 2
    w, bn = prepared["w"], prepared["bn"]
    CS = 4 * cin                      # space-to-depth channels (=16)
    C1 = w.shape[-1]                  # conv1 out channels (=16)
    C2 = w.shape[-1]                  # conv2 out channels (=16)

    # prep (single XLA fusion): NCHW->NHWC, pad 2, space-to-depth(2) -> 6.4 KB
    x = jnp.transpose(x_nchw, (0, 2, 3, 1)).astype(jnp.float32)
    xp = jnp.pad(x, ((0, 0), (2, 2), (2, 2), (0, 0)))              # (B,H+4,W+4,cin)
    Hs, Ws = OH1 + 2, OW1 + 2
    xs = (xp.reshape(B, Hs, 2, Ws, 2, cin)
            .transpose(0, 1, 3, 2, 4, 5)
            .reshape(B, Hs, Ws, CS))                               # (B,10,10,16)

    kernel = _make_kernel(B, OH1, OW1, CS, C1, C2)
    vmem = pl.BlockSpec(memory_space=pltpu.MemorySpace.VMEM)
    scratch_w = ((PW + 2 + 7) // 8) * 8                            # sublane-aligned

    y = pl.pallas_call(
        kernel,
        out_shape=jax.ShapeDtypeStruct((B * (PH // 2) * (PW // 2), C2),
                                       jnp.float32),
        in_specs=[vmem, vmem, vmem],
        out_specs=vmem,
        scratch_shapes=[pltpu.VMEM((B, PH + 2, scratch_w, C1), jnp.float32)],
        compiler_params=pltpu.CompilerParams(vmem_limit_bytes=32 * 1024 * 1024),
    )(xs, w, bn)

    # flat NHWC -> NCHW
    return jnp.transpose(y.reshape(B, PH // 2, PW // 2, C2), (0, 3, 1, 2))


if __name__ == "__main__":
    key = jax.random.PRNGKey(0)
    kx, kp = jax.random.split(key)
    # PyTorch-style NCHW input: batch=2, channels=input_dim=4, spatial=16x16
    x = jax.random.normal(kx, (2, 4, 16, 16), jnp.float32)
    params = init_params(kp, input_dim=4, output_dim=16)
    prepared = prepare_params(params)   # one-time weight repack, not per call

    out = shallow_net_forward(x, prepared)
    out = jax.block_until_ready(out)
    # 16x16 --conv s2--> 8x8 --maxpool2--> 4x4 --conv s1--> 4x4 --avgpool2--> 2x2
    assert out.shape == (2, 16, 2, 2), out.shape
    assert bool(jnp.all(jnp.isfinite(out)))
    print("KERNEL_OK")
</pallas_src>

<mosaic_0001>
module attributes {stable_mosaic.version = 11 : i64} {
  func.func @kernel(%arg0: memref<2x10x10x16xf32, #tpu.memory_space<vmem>>, %arg1: memref<2x144x16xf32, #tpu.memory_space<vmem>>, %arg2: memref<4x16xf32, #tpu.memory_space<vmem>>, %arg3: memref<8x16xf32, #tpu.memory_space<vmem>>, %arg4: memref<2x6x8x16xf32, #tpu.memory_space<vmem>>) attributes {dimension_semantics = [], scalar_prefetch = 0 : i64, scratch_operands = 1 : i64, tpu.core_type = #tpu.core_type<tc>} {
    %c0 = arith.constant 0 : index
    %c0_0 = arith.constant 0 : index
    %0 = vector.load %arg2[%c0, %c0_0] : memref<4x16xf32, #tpu.memory_space<vmem>>, vector<4x16xf32>
    %c0_1 = arith.constant 0 : index
    %c0_2 = arith.constant 0 : index
    %c0_3 = arith.constant 0 : index
    %c0_4 = arith.constant 0 : index
    %1 = vector.load %arg0[%c0_1, %c0_2, %c0_3, %c0_4] : memref<2x10x10x16xf32, #tpu.memory_space<vmem>>, vector<2x8x8x16xf32>
    %2 = vector.shape_cast %1 : vector<2x8x8x16xf32> to vector<128x16xf32>
    %c0_5 = arith.constant 0 : index
    %c0_6 = arith.constant 0 : index
    %c1 = arith.constant 1 : index
    %c0_7 = arith.constant 0 : index
    %3 = vector.load %arg0[%c0_5, %c0_6, %c1, %c0_7] : memref<2x10x10x16xf32, #tpu.memory_space<vmem>>, vector<2x8x8x16xf32>
    %4 = vector.shape_cast %3 : vector<2x8x8x16xf32> to vector<128x16xf32>
    %c0_8 = arith.constant 0 : index
    %c0_9 = arith.constant 0 : index
    %c2 = arith.constant 2 : index
    %c0_10 = arith.constant 0 : index
    %5 = vector.load %arg0[%c0_8, %c0_9, %c2, %c0_10] : memref<2x10x10x16xf32, #tpu.memory_space<vmem>>, vector<2x8x8x16xf32>
    %6 = vector.shape_cast %5 : vector<2x8x8x16xf32> to vector<128x16xf32>
    %c0_11 = arith.constant 0 : index
    %c1_12 = arith.constant 1 : index
    %c0_13 = arith.constant 0 : index
    %c0_14 = arith.constant 0 : index
    %7 = vector.load %arg0[%c0_11, %c1_12, %c0_13, %c0_14] : memref<2x10x10x16xf32, #tpu.memory_space<vmem>>, vector<2x8x8x16xf32>
    %8 = vector.shape_cast %7 : vector<2x8x8x16xf32> to vector<128x16xf32>
    %c0_15 = arith.constant 0 : index
    %c1_16 = arith.constant 1 : index
    %c1_17 = arith.constant 1 : index
    %c0_18 = arith.constant 0 : index
    %9 = vector.load %arg0[%c0_15, %c1_16, %c1_17, %c0_18] : memref<2x10x10x16xf32, #tpu.memory_space<vmem>>, vector<2x8x8x16xf32>
    %10 = vector.shape_cast %9 : vector<2x8x8x16xf32> to vector<128x16xf32>
    %c0_19 = arith.constant 0 : index
    %c1_20 = arith.constant 1 : index
    %c2_21 = arith.constant 2 : index
    %c0_22 = arith.constant 0 : index
    %11 = vector.load %arg0[%c0_19, %c1_20, %c2_21, %c0_22] : memref<2x10x10x16xf32, #tpu.memory_space<vmem>>, vector<2x8x8x16xf32>
    %12 = vector.shape_cast %11 : vector<2x8x8x16xf32> to vector<128x16xf32>
    %c0_23 = arith.constant 0 : index
    %c2_24 = arith.constant 2 : index
    %c0_25 = arith.constant 0 : index
    %c0_26 = arith.constant 0 : index
    %13 = vector.load %arg0[%c0_23, %c2_24, %c0_25, %c0_26] : memref<2x10x10x16xf32, #tpu.memory_space<vmem>>, vector<2x8x8x16xf32>
    %14 = vector.shape_cast %13 : vector<2x8x8x16xf32> to vector<128x16xf32>
    %c0_27 = arith.constant 0 : index
    %c2_28 = arith.constant 2 : index
    %c1_29 = arith.constant 1 : index
    %c0_30 = arith.constant 0 : index
    %15 = vector.load %arg0[%c0_27, %c2_28, %c1_29, %c0_30] : memref<2x10x10x16xf32, #tpu.memory_space<vmem>>, vector<2x8x8x16xf32>
    %16 = vector.shape_cast %15 : vector<2x8x8x16xf32> to vector<128x16xf32>
    %c0_31 = arith.constant 0 : index
    %c2_32 = arith.constant 2 : index
    %c2_33 = arith.constant 2 : index
    %c0_34 = arith.constant 0 : index
    %17 = vector.load %arg0[%c0_31, %c2_32, %c2_33, %c0_34] : memref<2x10x10x16xf32, #tpu.memory_space<vmem>>, vector<2x8x8x16xf32>
    %18 = vector.shape_cast %17 : vector<2x8x8x16xf32> to vector<128x16xf32>
    %19 = tpu.concatenate %2, %4, %6, %8, %10, %12, %14, %16, %18 in 1 : vector<128x16xf32>, vector<128x16xf32>, vector<128x16xf32>, vector<128x16xf32>, vector<128x16xf32>, vector<128x16xf32>, vector<128x16xf32>, vector<128x16xf32>, vector<128x16xf32> -> vector<128x144xf32>
    %c0_35 = arith.constant 0 : index
    %c0_36 = arith.constant 0 : index
    %c0_37 = arith.constant 0 : index
    %20 = vector.load %arg1[%c0_35, %c0_36, %c0_37] : memref<2x144x16xf32, #tpu.memory_space<vmem>>, vector<1x144x16xf32>
    %21 = vector.shape_cast %20 : vector<1x144x16xf32> to vector<144x16xf32>
    %cst = arith.constant dense<0.000000e+00> : vector<128x16xf32>
    %22 = tpu.matmul %19, %21, %cst {dimension_numbers = #tpu.dot_dimension_numbers<[1], [0], [0], [1], [0, 0, 1, 1], [], []>} : vector<128x144xf32>, vector<144x16xf32>, vector<128x16xf32> -> vector<128x16xf32>
    %23 = vector.extract_strided_slice %0 {offsets = [0, 0], sizes = [1, 16], strides = [1, 1]} : vector<4x16xf32> to vector<1x16xf32>
    %24 = vector.extract_strided_slice %0 {offsets = [1, 0], sizes = [1, 16], strides = [1, 1]} : vector<4x16xf32> to vector<1x16xf32>
    %cst_38 = arith.constant dense<0.000000e+00> : vector<16xf32>
    %25 = vector.multi_reduction <add>, %22, %cst_38 [0] : vector<128x16xf32> to vector<16xf32>
    %26 = vector.shape_cast %25 : vector<16xf32> to vector<1x16xf32>
    %cst_39 = arith.constant 1.280000e+02 : f32
    %27 = vector.broadcast %cst_39 : f32 to vector<1x16xf32>
    %28 = arith.divf %26, %27 : vector<1x16xf32>
    %29 = vector.broadcast %28 : vector<1x16xf32> to vector<128x16xf32>
    %30 = arith.subf %22, %29 : vector<128x16xf32>
    %31 = arith.mulf %30, %30 : vector<128x16xf32>
    %cst_40 = arith.constant dense<0.000000e+00> : vector<16xf32>
    %32 = vector.multi_reduction <add>, %31, %cst_40 [0] : vector<128x16xf32> to vector<16xf32>
    %33 = vector.shape_cast %32 : vector<16xf32> to vector<1x16xf32>
    %cst_41 = arith.constant 1.280000e+02 : f32
    %34 = vector.broadcast %cst_41 : f32 to vector<1x16xf32>
    %35 = arith.divf %33, %34 : vector<1x16xf32>
    %cst_42 = arith.constant 9.99999974E-6 : f32
    %36 = vector.broadcast %cst_42 : f32 to vector<1x16xf32>
    %37 = arith.addf %35, %36 : vector<1x16xf32>
    %38 = math.rsqrt %37 : vector<1x16xf32>
    %39 = arith.mulf %23, %38 : vector<1x16xf32>
    %40 = vector.broadcast %39 : vector<1x16xf32> to vector<128x16xf32>
    %41 = arith.mulf %30, %40 : vector<128x16xf32>
    %42 = vector.broadcast %24 : vector<1x16xf32> to vector<128x16xf32>
    %43 = arith.addf %41, %42 : vector<128x16xf32>
    %cst_43 = arith.constant 0.000000e+00 : f32
    %44 = vector.broadcast %cst_43 : f32 to vector<128x16xf32>
    %45 = arith.maximumf %43, %44 : vector<128x16xf32>
    %46 = vector.shape_cast %45 : vector<128x16xf32> to vector<2x4x2x8x16xf32>
    %cst_44 = arith.constant dense<0xFF800000> : vector<2x4x8x16xf32>
    %47 = vector.multi_reduction <maximumf>, %46, %cst_44 [2] : vector<2x4x2x8x16xf32> to vector<2x4x8x16xf32>
    %48 = vector.shape_cast %47 : vector<2x4x8x16xf32> to vector<2x4x4x2x16xf32>
    %cst_45 = arith.constant dense<0xFF800000> : vector<2x4x4x16xf32>
    %49 = vector.multi_reduction <maximumf>, %48, %cst_45 [3] : vector<2x4x4x2x16xf32> to vector<2x4x4x16xf32>
    %cst_46 = arith.constant 0.000000e+00 : f32
    %50 = vector.broadcast %cst_46 : f32 to vector<2x6x8x16xf32>
    %c0_47 = arith.constant 0 : index
    %c0_48 = arith.constant 0 : index
    %c0_49 = arith.constant 0 : index
    %c0_50 = arith.constant 0 : index
    %51 = vector.load %arg4[%c0_47, %c0_48, %c0_49, %c0_50] : memref<2x6x8x16xf32, #tpu.memory_space<vmem>>, vector<2x6x8x16xf32>
    tpu.vector_store %arg4[%c0_47, %c0_48, %c0_49, %c0_50], %50 {strides = array<i32>} : memref<2x6x8x16xf32, #tpu.memory_space<vmem>>, vector<2x6x8x16xf32>,
    %c0_51 = arith.constant 0 : index
    %c1_52 = arith.constant 1 : index
    %c1_53 = arith.constant 1 : index
    %c0_54 = arith.constant 0 : index
    %52 = vector.load %arg4[%c0_51, %c1_52, %c1_53, %c0_54] : memref<2x6x8x16xf32, #tpu.memory_space<vmem>>, vector<2x4x4x16xf32>
    tpu.vector_store %arg4[%c0_51, %c1_52, %c1_53, %c0_54], %49 {strides = array<i32>} : memref<2x6x8x16xf32, #tpu.memory_space<vmem>>, vector<2x4x4x16xf32>,
    %c0_55 = arith.constant 0 : index
    %c0_56 = arith.constant 0 : index
    %c0_57 = arith.constant 0 : index
    %c0_58 = arith.constant 0 : index
    %53 = vector.load %arg4[%c0_55, %c0_56, %c0_57, %c0_58] : memref<2x6x8x16xf32, #tpu.memory_space<vmem>>, vector<2x4x4x16xf32>
    %54 = vector.shape_cast %53 : vector<2x4x4x16xf32> to vector<32x16xf32>
    %c0_59 = arith.constant 0 : index
    %c0_60 = arith.constant 0 : index
    %c1_61 = arith.constant 1 : index
    %c0_62 = arith.constant 0 : index
    %55 = vector.load %arg4[%c0_59, %c0_60, %c1_61, %c0_62] : memref<2x6x8x16xf32, #tpu.memory_space<vmem>>, vector<2x4x4x16xf32>
    %56 = vector.shape_cast %55 : vector<2x4x4x16xf32> to vector<32x16xf32>
    %c0_63 = arith.constant 0 : index
    %c0_64 = arith.constant 0 : index
    %c2_65 = arith.constant 2 : index
    %c0_66 = arith.constant 0 : index
    %57 = vector.load %arg4[%c0_63, %c0_64, %c2_65, %c0_66] : memref<2x6x8x16xf32, #tpu.memory_space<vmem>>, vector<2x4x4x16xf32>
    %58 = vector.shape_cast %57 : vector<2x4x4x16xf32> to vector<32x16xf32>
    %c0_67 = arith.constant 0 : index
    %c1_68 = arith.constant 1 : index
    %c0_69 = arith.constant 0 : index
    %c0_70 = arith.constant 0 : index
    %59 = vector.load %arg4[%c0_67, %c1_68, %c0_69, %c0_70] : memref<2x6x8x16xf32, #tpu.memory_space<vmem>>, vector<2x4x4x16xf32>
    %60 = vector.shape_cast %59 : vector<2x4x4x16xf32> to vector<32x16xf32>
    %c0_71 = arith.constant 0 : index
    %c1_72 = arith.constant 1 : index
    %c1_73 = arith.constant 1 : index
    %c0_74 = arith.constant 0 : index
    %61 = vector.load %arg4[%c0_71, %c1_72, %c1_73, %c0_74] : memref<2x6x8x16xf32, #tpu.memory_space<vmem>>, vector<2x4x4x16xf32>
    %62 = vector.shape_cast %61 : vector<2x4x4x16xf32> to vector<32x16xf32>
    %c0_75 = arith.constant 0 : index
    %c1_76 = arith.constant 1 : index
    %c2_77 = arith.constant 2 : index
    %c0_78 = arith.constant 0 : index
    %63 = vector.load %arg4[%c0_75, %c1_76, %c2_77, %c0_78] : memref<2x6x8x16xf32, #tpu.memory_space<vmem>>, vector<2x4x4x16xf32>
    %64 = vector.shape_cast %63 : vector<2x4x4x16xf32> to vector<32x16xf32>
    %c0_79 = arith.constant 0 : index
    %c2_80 = arith.constant 2 : index
    %c0_81 = arith.constant 0 : index
    %c0_82 = arith.constant 0 : index
    %65 = vector.load %arg4[%c0_79, %c2_80, %c0_81, %c0_82] : memref<2x6x8x16xf32, #tpu.memory_space<vmem>>, vector<2x4x4x16xf32>
    %66 = vector.shape_cast %65 : vector<2x4x4x16xf32> to vector<32x16xf32>
    %c0_83 = arith.constant 0 : index
    %c2_84 = arith.constant 2 : index
    %c1_85 = arith.constant 1 : index
    %c0_86 = arith.constant 0 : index
    %67 = vector.load %arg4[%c0_83, %c2_84, %c1_85, %c0_86] : memref<2x6x8x16xf32, #tpu.memory_space<vmem>>, vector<2x4x4x16xf32>
    %68 = vector.shape_cast %67 : vector<2x4x4x16xf32> to vector<32x16xf32>
    %c0_87 = arith.constant 0 : index
    %c2_88 = arith.constant 2 : index
    %c2_89 = arith.constant 2 : index
    %c0_90 = arith.constant 0 : index
    %69 = vector.load %arg4[%c0_87, %c2_88, %c2_89, %c0_90] : memref<2x6x8x16xf32, #tpu.memory_space<vmem>>, vector<2x4x4x16xf32>
    %70 = vector.shape_cast %69 : vector<2x4x4x16xf32> to vector<32x16xf32>
    %71 = tpu.concatenate %54, %56, %58, %60, %62, %64, %66, %68, %70 in 1 : vector<32x16xf32>, vector<32x16xf32>, vector<32x16xf32>, vector<32x16xf32>, vector<32x16xf32>, vector<32x16xf32>, vector<32x16xf32>, vector<32x16xf32>, vector<32x16xf32> -> vector<32x144xf32>
    %c1_91 = arith.constant 1 : index
    %c0_92 = arith.constant 0 : index
    %c0_93 = arith.constant 0 : index
    %72 = vector.load %arg1[%c1_91, %c0_92, %c0_93] : memref<2x144x16xf32, #tpu.memory_space<vmem>>, vector<1x144x16xf32>
    %73 = vector.shape_cast %72 : vector<1x144x16xf32> to vector<144x16xf32>
    %cst_94 = arith.constant dense<0.000000e+00> : vector<32x16xf32>
    %74 = tpu.matmul %71, %73, %cst_94 {dimension_numbers = #tpu.dot_dimension_numbers<[1], [0], [0], [1], [0, 0, 1, 1], [], []>} : vector<32x144xf32>, vector<144x16xf32>, vector<32x16xf32> -> vector<32x16xf32>
    %75 = vector.extract_strided_slice %0 {offsets = [2, 0], sizes = [1, 16], strides = [1, 1]} : vector<4x16xf32> to vector<1x16xf32>
    %76 = vector.extract_strided_slice %0 {offsets = [3, 0], sizes = [1, 16], strides = [1, 1]} : vector<4x16xf32> to vector<1x16xf32>
    %cst_95 = arith.constant dense<0.000000e+00> : vector<16xf32>
    %77 = vector.multi_reduction <add>, %74, %cst_95 [0] : vector<32x16xf32> to vector<16xf32>
    %78 = vector.shape_cast %77 : vector<16xf32> to vector<1x16xf32>
    %cst_96 = arith.constant 3.200000e+01 : f32
    %79 = vector.broadcast %cst_96 : f32 to vector<1x16xf32>
    %80 = arith.divf %78, %79 : vector<1x16xf32>
    %81 = vector.broadcast %80 : vector<1x16xf32> to vector<32x16xf32>
    %82 = arith.subf %74, %81 : vector<32x16xf32>
    %83 = arith.mulf %82, %82 : vector<32x16xf32>
    %cst_97 = arith.constant dense<0.000000e+00> : vector<16xf32>
    %84 = vector.multi_reduction <add>, %83, %cst_97 [0] : vector<32x16xf32> to vector<16xf32>
    %85 = vector.shape_cast %84 : vector<16xf32> to vector<1x16xf32>
    %cst_98 = arith.constant 3.200000e+01 : f32
    %86 = vector.broadcast %cst_98 : f32 to vector<1x16xf32>
    %87 = arith.divf %85, %86 : vector<1x16xf32>
    %cst_99 = arith.constant 9.99999974E-6 : f32
    %88 = vector.broadcast %cst_99 : f32 to vector<1x16xf32>
    %89 = arith.addf %87, %88 : vector<1x16xf32>
    %90 = math.rsqrt %89 : vector<1x16xf32>
    %91 = arith.mulf %75, %90 : vector<1x16xf32>
    %92 = vector.broadcast %91 : vector<1x16xf32> to vector<32x16xf32>
    %93 = arith.mulf %82, %92 : vector<32x16xf32>
    %94 = vector.broadcast %76 : vector<1x16xf32> to vector<32x16xf32>
    %95 = arith.addf %93, %94 : vector<32x16xf32>
    %cst_100 = arith.constant 0.000000e+00 : f32
    %96 = vector.broadcast %cst_100 : f32 to vector<32x16xf32>
    %97 = arith.maximumf %95, %96 : vector<32x16xf32>
    %98 = vector.shape_cast %97 : vector<32x16xf32> to vector<2x2x2x4x16xf32>
    %cst_101 = arith.constant dense<0.000000e+00> : vector<2x2x4x16xf32>
    %99 = vector.multi_reduction <add>, %98, %cst_101 [2] : vector<2x2x2x4x16xf32> to vector<2x2x4x16xf32>
    %cst_102 = arith.constant 2.000000e+00 : f32
    %100 = vector.broadcast %cst_102 : f32 to vector<2x2x4x16xf32>
    %101 = arith.divf %99, %100 : vector<2x2x4x16xf32>
    %102 = vector.shape_cast %101 : vector<2x2x4x16xf32> to vector<2x2x2x2x16xf32>
    %cst_103 = arith.constant dense<0.000000e+00> : vector<2x2x2x16xf32>
    %103 = vector.multi_reduction <add>, %102, %cst_103 [3] : vector<2x2x2x2x16xf32> to vector<2x2x2x16xf32>
    %cst_104 = arith.constant 2.000000e+00 : f32
    %104 = vector.broadcast %cst_104 : f32 to vector<2x2x2x16xf32>
    %105 = arith.divf %103, %104 : vector<2x2x2x16xf32>
    %106 = vector.shape_cast %105 : vector<2x2x2x16xf32> to vector<8x16xf32>
    %c0_105 = arith.constant 0 : index
    %c0_106 = arith.constant 0 : index
    %107 = vector.load %arg3[%c0_105, %c0_106] : memref<8x16xf32, #tpu.memory_space<vmem>>, vector<8x16xf32>
    tpu.vector_store %arg3[%c0_105, %c0_106], %106 {strides = array<i32>} : memref<8x16xf32, #tpu.memory_space<vmem>>, vector<8x16xf32>,
    return
  }
}

</mosaic_0001>

<llo_original>
// kernel: shallow_net_forward.1
$region0: #{shallow_net_forward.1}
  #allocation0 [shape = 'u32[]', space=smem, size = 0x4, offset = 0x4, fixed_abs, tag = 'smem constant byte address 0x4 - core index']
  #allocation1 [shape = 'u32[144,128]{1,0:T(1,128)}', space=vmem, size = 0x12000, scoped, tag = 'internal scratch']
  #allocation2 [shape = 'f32[2,6,8,16]{3,2,1,0:T(8,128)}', space=vmem, size = 0xc000, scoped, tag = 'scratch operand']
  %s0 = inlined_call_operand.vmem [shape: f32[2,10,10,16], index: 0, kind: input, shape index: {}]
  %s1 = inlined_call_operand.vmem [shape: f32[2,144,16], index: 1, kind: input, shape index: {}]
  %s2 = inlined_call_operand.vmem [shape: f32[4,16], index: 2, kind: input, shape index: {}]
  %s3 = inlined_call_operand.hbm [shape: f32[8,16], index: 3, kind: output, shape index: {}]
  %s4 = sld [smem:[#allocation0]]
  $region22: #{shallow_net_forward.1} parent=0
    _
  %s6 = ssub.s32 1, %s4
  %s7 = scalar_select 0, %s6, %s4
  $region1: #{shallow_net_forward.1} parent=0
    #allocation3 [shape = 'u8[4096]{0}', space=vmem, size = 0x1000, scoped, tag = 'output window, operand 0, single buffered']
    #allocation4 [shape = 's32[1]{0}', space=sflag, size = 0x4, scoped, tag = 'scoped memory for shallow_net_forward.1']
    %8 = vsyncpa [#allocation4], 0
    // Predicated region
    $region2: #{shallow_net_forward.1} parent=1 // pred_check
      _
    $region3: #{shallow_net_forward.1} parent=1 // pred_check_branch
      %10 = sbr.rel (0) target = $region5
    $region4: #{shallow_net_forward.1} parent=1 // pred_region
      _
    $region5: #{shallow_net_forward.1} parent=1 // pred_fallthru
      _
    // Predicated region
    $region6: #{shallow_net_forward.1} parent=1 // pred_check
      _
    $region7: #{shallow_net_forward.1} parent=1 // pred_check_branch
      %12 = sbr.rel (0) target = $region9
    $region8: #{shallow_net_forward.1} parent=1 // pred_region
      _
    $region9: #{shallow_net_forward.1} parent=1 // pred_fallthru
      _
    // Predicated region
    $region10: #{shallow_net_forward.1} parent=1 // pred_check
      _
    $region11: #{shallow_net_forward.1} parent=1 // pred_check_branch
      %14 = sbr.rel (0) target = $region13
    $region12: #{shallow_net_forward.1} parent=1 // pred_region
      _
    $region13: #{shallow_net_forward.1} parent=1 // pred_fallthru
      _
    %v15 = vld [vmem:[%s2] sm:$0xf]
    %v16 = vld [vmem:[%s0] sm:$0xff]
    %v17 = vld [vmem:[%s0 + $0x10] sm:$0xff]
    %v18 = vld [vmem:[%s0 + $0x20] sm:$0xff]
    %v19 = vld [vmem:[%s0 + $0x30] sm:$0xff]
    %v20 = vld [vmem:[%s0 + $0x40] sm:$0xff]
    %v21 = vld [vmem:[%s0 + $0x50] sm:$0xff]
    %v22 = vld [vmem:[%s0 + $0x60] sm:$0xff]
    %v23 = vld [vmem:[%s0 + $0x70] sm:$0xff]
    %v24 = vld [vmem:[%s0 + $0xa0] sm:$0xff]
    %v25 = vld [vmem:[%s0 + $0xb0] sm:$0xff]
    %v26 = vld [vmem:[%s0 + $0xc0] sm:$0xff]
    %v27 = vld [vmem:[%s0 + $0xd0] sm:$0xff]
    %v28 = vld [vmem:[%s0 + $0xe0] sm:$0xff]
    %v29 = vld [vmem:[%s0 + $0xf0] sm:$0xff]
    %v30 = vld [vmem:[%s0 + $0x100] sm:$0xff]
    %v31 = vld [vmem:[%s0 + $0x110] sm:$0xff]
    %v32 = vld [vmem:[%s0 + $0x1] sm:$0xff]
    %v33 = vld [vmem:[%s0 + $0x11] sm:$0xff]
    %v34 = vld [vmem:[%s0 + $0x21] sm:$0xff]
    %v35 = vld [vmem:[%s0 + $0x31] sm:$0xff]
    %v36 = vld [vmem:[%s0 + $0x41] sm:$0xff]
    %v37 = vld [vmem:[%s0 + $0x51] sm:$0xff]
    %v38 = vld [vmem:[%s0 + $0x61] sm:$0xff]
    %v39 = vld [vmem:[%s0 + $0x71] sm:$0xff]
    %v40 = vld [vmem:[%s0 + $0xa1] sm:$0xff]
    %v41 = vld [vmem:[%s0 + $0xb1] sm:$0xff]
    %v42 = vld [vmem:[%s0 + $0xc1] sm:$0xff]
    %v43 = vld [vmem:[%s0 + $0xd1] sm:$0xff]
    %v44 = vld [vmem:[%s0 + $0xe1] sm:$0xff]
    %v45 = vld [vmem:[%s0 + $0xf1] sm:$0xff]
    %v46 = vld [vmem:[%s0 + $0x101] sm:$0xff]
    %v47 = vld [vmem:[%s0 + $0x111] sm:$0xff]
    %v48 = vld [vmem:[%s0 + $0x2] sm:$0xff]
    %v49 = vld [vmem:[%s0 + $0x12] sm:$0xff]
    %v50 = vld [vmem:[%s0 + $0x22] sm:$0xff]
    %v51 = vld [vmem:[%s0 + $0x32] sm:$0xff]
    %v52 = vld [vmem:[%s0 + $0x42] sm:$0xff]
    %v53 = vld [vmem:[%s0 + $0x52] sm:$0xff]
    %v54 = vld [vmem:[%s0 + $0x62] sm:$0xff]
    %v55 = vld [vmem:[%s0 + $0x72] sm:$0xff]
    %v56 = vld [vmem:[%s0 + $0xa2] sm:$0xff]
    %v57 = vld [vmem:[%s0 + $0xb2] sm:$0xff]
    %v58 = vld [vmem:[%s0 + $0xc2] sm:$0xff]
    %v59 = vld [vmem:[%s0 + $0xd2] sm:$0xff]
    %v60 = vld [vmem:[%s0 + $0xe2] sm:$0xff]
    %v61 = vld [vmem:[%s0 + $0xf2] sm:$0xff]
    %v62 = vld [vmem:[%s0 + $0x102] sm:$0xff]
    %v63 = vld [vmem:[%s0 + $0x112] sm:$0xff]
    %s64 = scalar_lea.vmem %s0, 16
    %v65 = vld [vmem:[%s64] sm:$0xff]
    %v66 = vld [vmem:[%s64 + $0x10] sm:$0xff]
    %v67 = vld [vmem:[%s64 + $0x20] sm:$0xff]
    %v68 = vld [vmem:[%s64 + $0x30] sm:$0xff]
    %v69 = vld [vmem:[%s64 + $0x40] sm:$0xff]
    %v70 = vld [vmem:[%s64 + $0x50] sm:$0xff]
    %v71 = vld [vmem:[%s64 + $0x60] sm:$0xff]
    %v72 = vld [vmem:[%s64 + $0x70] sm:$0xff]
    %v73 = vld [vmem:[%s64 + $0xa0] sm:$0xff]
    %v74 = vld [vmem:[%s64 + $0xb0] sm:$0xff]
    %v75 = vld [vmem:[%s64 + $0xc0] sm:$0xff]
    %v76 = vld [vmem:[%s64 + $0xd0] sm:$0xff]
    %v77 = vld [vmem:[%s64 + $0xe0] sm:$0xff]
    %v78 = vld [vmem:[%s64 + $0xf0] sm:$0xff]
    %v79 = vld [vmem:[%s64 + $0x100] sm:$0xff]
    %v80 = vld [vmem:[%s64 + $0x110] sm:$0xff]
    %v81 = vld [vmem:[%s64 + $0x1] sm:$0xff]
    %v82 = vld [vmem:[%s64 + $0x11] sm:$0xff]
    %v83 = vld [vmem:[%s64 + $0x21] sm:$0xff]
    %v84 = vld [vmem:[%s64 + $0x31] sm:$0xff]
    %v85 = vld [vmem:[%s64 + $0x41] sm:$0xff]
    %v86 = vld [vmem:[%s64 + $0x51] sm:$0xff]
    %v87 = vld [vmem:[%s64 + $0x61] sm:$0xff]
    %v88 = vld [vmem:[%s64 + $0x71] sm:$0xff]
    %v89 = vld [vmem:[%s64 + $0xa1] sm:$0xff]
    %v90 = vld [vmem:[%s64 + $0xb1] sm:$0xff]
    %v91 = vld [vmem:[%s64 + $0xc1] sm:$0xff]
    %v92 = vld [vmem:[%s64 + $0xd1] sm:$0xff]
    %v93 = vld [vmem:[%s64 + $0xe1] sm:$0xff]
    %v94 = vld [vmem:[%s64 + $0xf1] sm:$0xff]
    %v95 = vld [vmem:[%s64 + $0x101] sm:$0xff]
    %v96 = vld [vmem:[%s64 + $0x111] sm:$0xff]
    %v97 = vld [vmem:[%s64 + $0x2] sm:$0xff]
    %v98 = vld [vmem:[%s64 + $0x12] sm:$0xff]
    %v99 = vld [vmem:[%s64 + $0x22] sm:$0xff]
    %v100 = vld [vmem:[%s64 + $0x32] sm:$0xff]
    %v101 = vld [vmem:[%s64 + $0x42] sm:$0xff]
    %v102 = vld [vmem:[%s64 + $0x52] sm:$0xff]
    %v103 = vld [vmem:[%s64 + $0x62] sm:$0xff]
    %v104 = vld [vmem:[%s64 + $0x72] sm:$0xff]
    %v105 = vld [vmem:[%s64 + $0xa2] sm:$0xff]
    %v106 = vld [vmem:[%s64 + $0xb2] sm:$0xff]
    %v107 = vld [vmem:[%s64 + $0xc2] sm:$0xff]
    %v108 = vld [vmem:[%s64 + $0xd2] sm:$0xff]
    %v109 = vld [vmem:[%s64 + $0xe2] sm:$0xff]
    %v110 = vld [vmem:[%s64 + $0xf2] sm:$0xff]
    %v111 = vld [vmem:[%s64 + $0x102] sm:$0xff]
    %v112 = vld [vmem:[%s64 + $0x112] sm:$0xff]
    %s113 = scalar_lea.vmem %s0, 32
    %v114 = vld [vmem:[%s113] sm:$0xff]
    %v115 = vld [vmem:[%s113 + $0x10] sm:$0xff]
    %v116 = vld [vmem:[%s113 + $0x20] sm:$0xff]
    %v117 = vld [vmem:[%s113 + $0x30] sm:$0xff]
    %v118 = vld [vmem:[%s113 + $0x40] sm:$0xff]
    %v119 = vld [vmem:[%s113 + $0x50] sm:$0xff]
    %v120 = vld [vmem:[%s113 + $0x60] sm:$0xff]
    %v121 = vld [vmem:[%s113 + $0x70] sm:$0xff]
    %v122 = vld [vmem:[%s113 + $0xa0] sm:$0xff]
    %v123 = vld [vmem:[%s113 + $0xb0] sm:$0xff]
    %v124 = vld [vmem:[%s113 + $0xc0] sm:$0xff]
    %v125 = vld [vmem:[%s113 + $0xd0] sm:$0xff]
    %v126 = vld [vmem:[%s113 + $0xe0] sm:$0xff]
    %v127 = vld [vmem:[%s113 + $0xf0] sm:$0xff]
    %v128 = vld [vmem:[%s113 + $0x100] sm:$0xff]
    %v129 = vld [vmem:[%s113 + $0x110] sm:$0xff]
    %v130 = vld [vmem:[%s113 + $0x1] sm:$0xff]
    %v131 = vld [vmem:[%s113 + $0x11] sm:$0xff]
    %v132 = vld [vmem:[%s113 + $0x21] sm:$0xff]
    %v133 = vld [vmem:[%s113 + $0x31] sm:$0xff]
    %v134 = vld [vmem:[%s113 + $0x41] sm:$0xff]
    %v135 = vld [vmem:[%s113 + $0x51] sm:$0xff]
    %v136 = vld [vmem:[%s113 + $0x61] sm:$0xff]
    %v137 = vld [vmem:[%s113 + $0x71] sm:$0xff]
    %v138 = vld [vmem:[%s113 + $0xa1] sm:$0xff]
    %v139 = vld [vmem:[%s113 + $0xb1] sm:$0xff]
    %v140 = vld [vmem:[%s113 + $0xc1] sm:$0xff]
    %v141 = vld [vmem:[%s113 + $0xd1] sm:$0xff]
    %v142 = vld [vmem:[%s113 + $0xe1] sm:$0xff]
    %v143 = vld [vmem:[%s113 + $0xf1] sm:$0xff]
    %v144 = vld [vmem:[%s113 + $0x101] sm:$0xff]
    %v145 = vld [vmem:[%s113 + $0x111] sm:$0xff]
    %v146 = vld [vmem:[%s113 + $0x2] sm:$0xff]
    %v147 = vld [vmem:[%s113 + $0x12] sm:$0xff]
    %v148 = vld [vmem:[%s113 + $0x22] sm:$0xff]
    %v149 = vld [vmem:[%s113 + $0x32] sm:$0xff]
    %v150 = vld [vmem:[%s113 + $0x42] sm:$0xff]
    %v151 = vld [vmem:[%s113 + $0x52] sm:$0xff]
    %v152 = vld [vmem:[%s113 + $0x62] sm:$0xff]
    %v153 = vld [vmem:[%s113 + $0x72] sm:$0xff]
    %v154 = vld [vmem:[%s113 + $0xa2] sm:$0xff]
    %v155 = vld [vmem:[%s113 + $0xb2] sm:$0xff]
    %v156 = vld [vmem:[%s113 + $0xc2] sm:$0xff]
    %v157 = vld [vmem:[%s113 + $0xd2] sm:$0xff]
    %v158 = vld [vmem:[%s113 + $0xe2] sm:$0xff]
    %v159 = vld [vmem:[%s113 + $0xf2] sm:$0xff]
    %v160 = vld [vmem:[%s113 + $0x102] sm:$0xff]
    %v161 = vld [vmem:[%s113 + $0x112] sm:$0xff]
    %178 = vrot.lane.b32.xlu0 %v32, 16
    %v179 = vpop.permute.xlu0 %178
    %180 = vrot.lane.b32.xlu0 %v33, 16
    %v181 = vpop.permute.xlu0 %180
    %182 = vrot.lane.b32.xlu0 %v34, 16
    %v183 = vpop.permute.xlu0 %182
    %184 = vrot.lane.b32.xlu0 %v35, 16
    %v185 = vpop.permute.xlu0 %184
    %186 = vrot.lane.b32.xlu0 %v36, 16
    %v187 = vpop.permute.xlu0 %186
    %188 = vrot.lane.b32.xlu0 %v37, 16
    %v189 = vpop.permute.xlu0 %188
    %190 = vrot.lane.b32.xlu0 %v38, 16
    %v191 = vpop.permute.xlu0 %190
    %192 = vrot.lane.b32.xlu0 %v39, 16
    %v193 = vpop.permute.xlu0 %192
    %194 = vrot.lane.b32.xlu0 %v40, 16
    %v195 = vpop.permute.xlu0 %194
    %196 = vrot.lane.b32.xlu0 %v41, 16
    %v197 = vpop.permute.xlu0 %196
    %198 = vrot.lane.b32.xlu0 %v42, 16
    %v199 = vpop.permute.xlu0 %198
    %200 = vrot.lane.b32.xlu0 %v43, 16
    %v201 = vpop.permute.xlu0 %200
    %202 = vrot.lane.b32.xlu0 %v44, 16
    %v203 = vpop.permute.xlu0 %202
    %204 = vrot.lane.b32.xlu0 %v45, 16
    %v205 = vpop.permute.xlu0 %204
    %206 = vrot.lane.b32.xlu0 %v46, 16
    %v207 = vpop.permute.xlu0 %206
    %208 = vrot.lane.b32.xlu0 %v47, 16
    %v209 = vpop.permute.xlu0 %208
    %242 = vrot.lane.b32.xlu0 %v48, 32
    %v243 = vpop.permute.xlu0 %242
    %244 = vrot.lane.b32.xlu0 %v49, 32
    %v245 = vpop.permute.xlu0 %244
    %246 = vrot.lane.b32.xlu0 %v50, 32
    %v247 = vpop.permute.xlu0 %246
    %248 = vrot.lane.b32.xlu0 %v51, 32
    %v249 = vpop.permute.xlu0 %248
    %250 = vrot.lane.b32.xlu0 %v52, 32
    %v251 = vpop.permute.xlu0 %250
    %252 = vrot.lane.b32.xlu0 %v53, 32
    %v253 = vpop.permute.xlu0 %252
    %254 = vrot.lane.b32.xlu0 %v54, 32
    %v255 = vpop.permute.xlu0 %254
    %256 = vrot.lane.b32.xlu0 %v55, 32
    %v257 = vpop.permute.xlu0 %256
    %258 = vrot.lane.b32.xlu0 %v56, 32
    %v259 = vpop.permute.xlu0 %258
    %260 = vrot.lane.b32.xlu0 %v57, 32
    %v261 = vpop.permute.xlu0 %260
    %262 = vrot.lane.b32.xlu0 %v58, 32
    %v263 = vpop.permute.xlu0 %262
    %264 = vrot.lane.b32.xlu0 %v59, 32
    %v265 = vpop.permute.xlu0 %264
    %266 = vrot.lane.b32.xlu0 %v60, 32
    %v267 = vpop.permute.xlu0 %266
    %268 = vrot.lane.b32.xlu0 %v61, 32
    %v269 = vpop.permute.xlu0 %268
    %270 = vrot.lane.b32.xlu0 %v62, 32
    %v271 = vpop.permute.xlu0 %270
    %272 = vrot.lane.b32.xlu0 %v63, 32
    %v273 = vpop.permute.xlu0 %272
    %306 = vrot.lane.b32.xlu0 %v65, 48
    %v307 = vpop.permute.xlu0 %306
    %308 = vrot.lane.b32.xlu0 %v66, 48
    %v309 = vpop.permute.xlu0 %308
    %310 = vrot.lane.b32.xlu0 %v67, 48
    %v311 = vpop.permute.xlu0 %310
    %312 = vrot.lane.b32.xlu0 %v68, 48
    %v313 = vpop.permute.xlu0 %312
    %314 = vrot.lane.b32.xlu0 %v69, 48
    %v315 = vpop.permute.xlu0 %314
    %316 = vrot.lane.b32.xlu0 %v70, 48
    %v317 = vpop.permute.xlu0 %316
    %318 = vrot.lane.b32.xlu0 %v71, 48
    %v319 = vpop.permute.xlu0 %318
    %320 = vrot.lane.b32.xlu0 %v72, 48
    %v321 = vpop.permute.xlu0 %320
    %322 = vrot.lane.b32.xlu0 %v73, 48
    %v323 = vpop.permute.xlu0 %322
    %324 = vrot.lane.b32.xlu0 %v74, 48
    %v325 = vpop.permute.xlu0 %324
    %326 = vrot.lane.b32.xlu0 %v75, 48
    %v327 = vpop.permute.xlu0 %326
    %328 = vrot.lane.b32.xlu0 %v76, 48
    %v329 = vpop.permute.xlu0 %328
    %330 = vrot.lane.b32.xlu0 %v77, 48
    %v331 = vpop.permute.xlu0 %330
    %332 = vrot.lane.b32.xlu0 %v78, 48
    %v333 = vpop.permute.xlu0 %332
    %334 = vrot.lane.b32.xlu0 %v79, 48
    %v335 = vpop.permute.xlu0 %334
    %336 = vrot.lane.b32.xlu0 %v80, 48
    %v337 = vpop.permute.xlu0 %336
    %370 = vrot.lane.b32.xlu0 %v81, 64
    %v371 = vpop.permute.xlu0 %370
    %372 = vrot.lane.b32.xlu0 %v82, 64
    %v373 = vpop.permute.xlu0 %372
    %374 = vrot.lane.b32.xlu0 %v83, 64
    %v375 = vpop.permute.xlu0 %374
    %376 = vrot.lane.b32.xlu0 %v84, 64
    %v377 = vpop.permute.xlu0 %376
    %378 = vrot.lane.b32.xlu0 %v85, 64
    %v379 = vpop.permute.xlu0 %378
    %380 = vrot.lane.b32.xlu0 %v86, 64
    %v381 = vpop.permute.xlu0 %380
    %382 = vrot.lane.b32.xlu0 %v87, 64
    %v383 = vpop.permute.xlu0 %382
    %384 = vrot.lane.b32.xlu0 %v88, 64
    %v385 = vpop.permute.xlu0 %384
    %386 = vrot.lane.b32.xlu0 %v89, 64
    %v387 = vpop.permute.xlu0 %386
    %388 = vrot.lane.b32.xlu0 %v90, 64
    %v389 = vpop.permute.xlu0 %388
    %390 = vrot.lane.b32.xlu0 %v91, 64
    %v391 = vpop.permute.xlu0 %390
    %392 = vrot.lane.b32.xlu0 %v92, 64
    %v393 = vpop.permute.xlu0 %392
    %394 = vrot.lane.b32.xlu0 %v93, 64
    %v395 = vpop.permute.xlu0 %394
    %396 = vrot.lane.b32.xlu0 %v94, 64
    %v397 = vpop.permute.xlu0 %396
    %398 = vrot.lane.b32.xlu0 %v95, 64
    %v399 = vpop.permute.xlu0 %398
    %400 = vrot.lane.b32.xlu0 %v96, 64
    %v401 = vpop.permute.xlu0 %400
    %434 = vrot.lane.b32.xlu0 %v97, 80
    %v435 = vpop.permute.xlu0 %434
    %436 = vrot.lane.b32.xlu0 %v98, 80
    %v437 = vpop.permute.xlu0 %436
    %438 = vrot.lane.b32.xlu0 %v99, 80
    %v439 = vpop.permute.xlu0 %438
    %440 = vrot.lane.b32.xlu0 %v100, 80
    %v441 = vpop.permute.xlu0 %440
    %442 = vrot.lane.b32.xlu0 %v101, 80
    %v443 = vpop.permute.xlu0 %442
    %444 = vrot.lane.b32.xlu0 %v102, 80
    %v445 = vpop.permute.xlu0 %444
    %446 = vrot.lane.b32.xlu0 %v103, 80
    %v447 = vpop.permute.xlu0 %446
    %448 = vrot.lane.b32.xlu0 %v104, 80
    %v449 = vpop.permute.xlu0 %448
    %450 = vrot.lane.b32.xlu0 %v105, 80
    %v451 = vpop.permute.xlu0 %450
    %452 = vrot.lane.b32.xlu0 %v106, 80
    %v453 = vpop.permute.xlu0 %452
    %454 = vrot.lane.b32.xlu0 %v107, 80
    %v455 = vpop.permute.xlu0 %454
    %456 = vrot.lane.b32.xlu0 %v108, 80
    %v457 = vpop.permute.xlu0 %456
    %458 = vrot.lane.b32.xlu0 %v109, 80
    %v459 = vpop.permute.xlu0 %458
    %460 = vrot.lane.b32.xlu0 %v110, 80
    %v461 = vpop.permute.xlu0 %460
    %462 = vrot.lane.b32.xlu0 %v111, 80
    %v463 = vpop.permute.xlu0 %462
    %464 = vrot.lane.b32.xlu0 %v112, 80
    %v465 = vpop.permute.xlu0 %464
    %498 = vrot.lane.b32.xlu0 %v114, 96
    %v499 = vpop.permute.xlu0 %498
    %500 = vrot.lane.b32.xlu0 %v115, 96
    %v501 = vpop.permute.xlu0 %500
    %502 = vrot.lane.b32.xlu0 %v116, 96
    %v503 = vpop.permute.xlu0 %502
    %504 = vrot.lane.b32.xlu0 %v117, 96
    %v505 = vpop.permute.xlu0 %504
    %506 = vrot.lane.b32.xlu0 %v118, 96
    %v507 = vpop.permute.xlu0 %506
    %508 = vrot.lane.b32.xlu0 %v119, 96
    %v509 = vpop.permute.xlu0 %508
    %510 = vrot.lane.b32.xlu0 %v120, 96
    %v511 = vpop.permute.xlu0 %510
    %512 = vrot.lane.b32.xlu0 %v121, 96
    %v513 = vpop.permute.xlu0 %512
    %514 = vrot.lane.b32.xlu0 %v122, 96
    %v515 = vpop.permute.xlu0 %514
    %516 = vrot.lane.b32.xlu0 %v123, 96
    %v517 = vpop.permute.xlu0 %516
    %518 = vrot.lane.b32.xlu0 %v124, 96
    %v519 = vpop.permute.xlu0 %518
    %520 = vrot.lane.b32.xlu0 %v125, 96
    %v521 = vpop.permute.xlu0 %520
    %522 = vrot.lane.b32.xlu0 %v126, 96
    %v523 = vpop.permute.xlu0 %522
    %524 = vrot.lane.b32.xlu0 %v127, 96
    %v525 = vpop.permute.xlu0 %524
    %526 = vrot.lane.b32.xlu0 %v128, 96
    %v527 = vpop.permute.xlu0 %526
    %528 = vrot.lane.b32.xlu0 %v129, 96
    %v529 = vpop.permute.xlu0 %528
    %562 = vrot.lane.b32.xlu0 %v130, 112
    %v563 = vpop.permute.xlu0 %562
    %564 = vrot.lane.b32.xlu0 %v131, 112
    %v565 = vpop.permute.xlu0 %564
    %566 = vrot.lane.b32.xlu0 %v132, 112
    %v567 = vpop.permute.xlu0 %566
    %568 = vrot.lane.b32.xlu0 %v133, 112
    %v569 = vpop.permute.xlu0 %568
    %570 = vrot.lane.b32.xlu0 %v134, 112
    %v571 = vpop.permute.xlu0 %570
    %572 = vrot.lane.b32.xlu0 %v135, 112
    %v573 = vpop.permute.xlu0 %572
    %574 = vrot.lane.b32.xlu0 %v136, 112
    %v575 = vpop.permute.xlu0 %574
    %576 = vrot.lane.b32.xlu0 %v137, 112
    %v577 = vpop.permute.xlu0 %576
    %578 = vrot.lane.b32.xlu0 %v138, 112
    %v579 = vpop.permute.xlu0 %578
    %580 = vrot.lane.b32.xlu0 %v139, 112
    %v581 = vpop.permute.xlu0 %580
    %582 = vrot.lane.b32.xlu0 %v140, 112
    %v583 = vpop.permute.xlu0 %582
    %584 = vrot.lane.b32.xlu0 %v141, 112
    %v585 = vpop.permute.xlu0 %584
    %586 = vrot.lane.b32.xlu0 %v142, 112
    %v587 = vpop.permute.xlu0 %586
    %588 = vrot.lane.b32.xlu0 %v143, 112
    %v589 = vpop.permute.xlu0 %588
    %590 = vrot.lane.b32.xlu0 %v144, 112
    %v591 = vpop.permute.xlu0 %590
    %592 = vrot.lane.b32.xlu0 %v145, 112
    %v593 = vpop.permute.xlu0 %592
    %vm610 = vcmask 130048
    %v611 = vsel %vm610, %v16, %v179
    %v612 = vsel %vm610, %v17, %v181
    %v613 = vsel %vm610, %v18, %v183
    %v614 = vsel %vm610, %v19, %v185
    %v615 = vsel %vm610, %v20, %v187
    %v616 = vsel %vm610, %v21, %v189
    %v617 = vsel %vm610, %v22, %v191
    %v618 = vsel %vm610, %v23, %v193
    %v619 = vsel %vm610, %v24, %v195
    %v620 = vsel %vm610, %v25, %v197
    %v621 = vsel %vm610, %v26, %v199
    %v622 = vsel %vm610, %v27, %v201
    %v623 = vsel %vm610, %v28, %v203
    %v624 = vsel %vm610, %v29, %v205
    %v625 = vsel %vm610, %v30, %v207
    %v626 = vsel %vm610, %v31, %v209
    %vm627 = vcmask 261120
    %v628 = vsel %vm627, %v611, %v243
    %v629 = vsel %vm627, %v612, %v245
    %v630 = vsel %vm627, %v613, %v247
    %v631 = vsel %vm627, %v614, %v249
    %v632 = vsel %vm627, %v615, %v251
    %v633 = vsel %vm627, %v616, %v253
    %v634 = vsel %vm627, %v617, %v255
    %v635 = vsel %vm627, %v618, %v257
    %v636 = vsel %vm627, %v619, %v259
    %v637 = vsel %vm627, %v620, %v261
    %v638 = vsel %vm627, %v621, %v263
    %v639 = vsel %vm627, %v622, %v265
    %v640 = vsel %vm627, %v623, %v267
    %v641 = vsel %vm627, %v624, %v269
    %v642 = vsel %vm627, %v625, %v271
    %v643 = vsel %vm627, %v626, %v273
    %vm644 = vcmask 392192
    %v645 = vsel %vm644, %v628, %v307
    %v646 = vsel %vm644, %v629, %v309
    %v647 = vsel %vm644, %v630, %v311
    %v648 = vsel %vm644, %v631, %v313
    %v649 = vsel %vm644, %v632, %v315
    %v650 = vsel %vm644, %v633, %v317
    %v651 = vsel %vm644, %v634, %v319
    %v652 = vsel %vm644, %v635, %v321
    %v653 = vsel %vm644, %v636, %v323
    %v654 = vsel %vm644, %v637, %v325
    %v655 = vsel %vm644, %v638, %v327
    %v656 = vsel %vm644, %v639, %v329
    %v657 = vsel %vm644, %v640, %v331
    %v658 = vsel %vm644, %v641, %v333
    %v659 = vsel %vm644, %v642, %v335
    %v660 = vsel %vm644, %v643, %v337
    %vm661 = vcmask 523264
    %v662 = vsel %vm661, %v645, %v371
    %v663 = vsel %vm661, %v646, %v373
    %v664 = vsel %vm661, %v647, %v375
    %v665 = vsel %vm661, %v648, %v377
    %v666 = vsel %vm661, %v649, %v379
    %v667 = vsel %vm661, %v650, %v381
    %v668 = vsel %vm661, %v651, %v383
    %v669 = vsel %vm661, %v652, %v385
    %v670 = vsel %vm661, %v653, %v387
    %v671 = vsel %vm661, %v654, %v389
    %v672 = vsel %vm661, %v655, %v391
    %v673 = vsel %vm661, %v656, %v393
    %v674 = vsel %vm661, %v657, %v395
    %v675 = vsel %vm661, %v658, %v397
    %v676 = vsel %vm661, %v659, %v399
    %v677 = vsel %vm661, %v660, %v401
    %vm678 = vcmask 654336
    %v679 = vsel %vm678, %v662, %v435
    %v680 = vsel %vm678, %v663, %v437
    %v681 = vsel %vm678, %v664, %v439
    %v682 = vsel %vm678, %v665, %v441
    %v683 = vsel %vm678, %v666, %v443
    %v684 = vsel %vm678, %v667, %v445
    %v685 = vsel %vm678, %v668, %v447
    %v686 = vsel %vm678, %v669, %v449
    %v687 = vsel %vm678, %v670, %v451
    %v688 = vsel %vm678, %v671, %v453
    %v689 = vsel %vm678, %v672, %v455
    %v690 = vsel %vm678, %v673, %v457
    %v691 = vsel %vm678, %v674, %v459
    %v692 = vsel %vm678, %v675, %v461
    %v693 = vsel %vm678, %v676, %v463
    %v694 = vsel %vm678, %v677, %v465
    %vm695 = vcmask 785408
    %v696 = vsel %vm695, %v679, %v499
    %v697 = vsel %vm695, %v680, %v501
    %v698 = vsel %vm695, %v681, %v503
    %v699 = vsel %vm695, %v682, %v505
    %v700 = vsel %vm695, %v683, %v507
    %v701 = vsel %vm695, %v684, %v509
    %v702 = vsel %vm695, %v685, %v511
    %v703 = vsel %vm695, %v686, %v513
    %v704 = vsel %vm695, %v687, %v515
    %v705 = vsel %vm695, %v688, %v517
    %v706 = vsel %vm695, %v689, %v519
    %v707 = vsel %vm695, %v690, %v521
    %v708 = vsel %vm695, %v691, %v523
    %v709 = vsel %vm695, %v692, %v525
    %v710 = vsel %vm695, %v693, %v527
    %v711 = vsel %vm695, %v694, %v529
    %vm712 = vcmask 916480
    %v713 = vsel %vm712, %v696, %v563
    %v714 = vsel %vm712, %v697, %v565
    %v715 = vsel %vm712, %v698, %v567
    %v716 = vsel %vm712, %v699, %v569
    %v717 = vsel %vm712, %v700, %v571
    %v718 = vsel %vm712, %v701, %v573
    %v719 = vsel %vm712, %v702, %v575
    %v720 = vsel %vm712, %v703, %v577
    %v721 = vsel %vm712, %v704, %v579
    %v722 = vsel %vm712, %v705, %v581
    %v723 = vsel %vm712, %v706, %v583
    %v724 = vsel %vm712, %v707, %v585
    %v725 = vsel %vm712, %v708, %v587
    %v726 = vsel %vm712, %v709, %v589
    %v727 = vsel %vm712, %v710, %v591
    %v728 = vsel %vm712, %v711, %v593
    %v729 = vld [vmem:[%s1] sm:$0xff]
    %v730 = vld [vmem:[%s1 + $0x8] sm:$0xff]
    %v731 = vld [vmem:[%s1 + $0x10] sm:$0xff]
    %v732 = vld [vmem:[%s1 + $0x18] sm:$0xff]
    %v733 = vld [vmem:[%s1 + $0x20] sm:$0xff]
    %v734 = vld [vmem:[%s1 + $0x28] sm:$0xff]
    %v735 = vld [vmem:[%s1 + $0x30] sm:$0xff]
    %v736 = vld [vmem:[%s1 + $0x38] sm:$0xff]
    %v737 = vld [vmem:[%s1 + $0x40] sm:$0xff]
    %v738 = vld [vmem:[%s1 + $0x48] sm:$0xff]
    %v739 = vld [vmem:[%s1 + $0x50] sm:$0xff]
    %v740 = vld [vmem:[%s1 + $0x58] sm:$0xff]
    %v741 = vld [vmem:[%s1 + $0x60] sm:$0xff]
    %v742 = vld [vmem:[%s1 + $0x68] sm:$0xff]
    %v743 = vld [vmem:[%s1 + $0x70] sm:$0xff]
    %v744 = vld [vmem:[%s1 + $0x78] sm:$0xff]
    %v745 = vld [vmem:[%s1 + $0x80] sm:$0xff]
    %v746 = vld [vmem:[%s1 + $0x88] sm:$0xff]
    %v748 = vsel %vm610, %v146, 0
    %v751 = vsel %vm610, %v147, 0
    %v754 = vsel %vm610, %v148, 0
    %v757 = vsel %vm610, %v149, 0
    %v760 = vsel %vm610, %v150, 0
    %v763 = vsel %vm610, %v151, 0
    %v766 = vsel %vm610, %v152, 0
    %v769 = vsel %vm610, %v153, 0
    %v772 = vsel %vm610, %v154, 0
    %v775 = vsel %vm610, %v155, 0
    %v778 = vsel %vm610, %v156, 0
    %v781 = vsel %vm610, %v157, 0
    %v784 = vsel %vm610, %v158, 0
    %v787 = vsel %vm610, %v159, 0
    %v790 = vsel %vm610, %v160, 0
    %v793 = vsel %vm610, %v161, 0
    %795 = vmatprep.subr.mxu0 0.0
    %796 = vmatpush1.msra.mxu0 %v729
    %797 = vmatprep.subr.mxu0 0.0
    %798 = vmatpush1.msra.mxu0 %v730
    %799 = vmatprep.subr.mxu0 0.0
    %800 = vmatpush1.msra.mxu0 %v731
    %801 = vmatprep.subr.mxu0 0.0
    %802 = vmatpush1.msra.mxu0 %v732
    %803 = vmatprep.subr.mxu0 0.0
    %804 = vmatpush1.msra.mxu0 %v733
    %805 = vmatprep.subr.mxu0 0.0
    %806 = vmatpush1.msra.mxu0 %v734
    %807 = vmatprep.subr.mxu0 0.0
    %808 = vmatpush1.msra.mxu0 %v735
    %809 = vmatprep.subr.mxu0 0.0
    %810 = vmatpush1.msra.mxu0 %v736
    %811 = vmatprep.subr.mxu0 0.0
    %812 = vmatpush1.msra.mxu0 %v737
    %813 = vmatprep.subr.mxu0 0.0
    %814 = vmatpush1.msra.mxu0 %v738
    %815 = vmatprep.subr.mxu0 0.0
    %816 = vmatpush1.msra.mxu0 %v739
    %817 = vmatprep.subr.mxu0 0.0
    %818 = vmatpush1.msra.mxu0 %v740
    %819 = vmatprep.subr.mxu0 0.0
    %820 = vmatpush1.msra.mxu0 %v741
    %821 = vmatprep.subr.mxu0 0.0
    %822 = vmatpush1.msra.mxu0 %v742
    %823 = vmatprep.subr.mxu0 0.0
    %824 = vmatpush1.msra.mxu0 %v743
    %825 = vmatprep.subr.mxu0 0.0
    %826 = vmatpush1.msra.mxu0 %v744
    %827 = vmatprep.subr.mxu0 0.0
    %828 = vmatpush1.msra.mxu0 %v745
    %829 = vmatprep.subr.mxu0 0.0
    %830 = vmatpush1.msra.mxu0 %v746
    %831 = vmatprep.subr.mxu0 0.0
    %832 = vmatpush1.msra.mxu0 0.0
    %833 = vmatprep.subr.mxu0 0.0
    %834 = vmatpush1.msra.mxu0 0.0
    %835 = vmatprep.subr.mxu0 0.0
    %836 = vmatpush1.msra.mxu0 0.0
    %837 = vmatprep.subr.mxu0 0.0
    %838 = vmatpush1.msra.mxu0 0.0
    %839 = vmatprep.subr.mxu0 0.0
    %840 = vmatpush1.msra.mxu0 0.0
    %841 = vmatprep.subr.mxu0 0.0
    %842 = vmatpush1.msra.mxu0 0.0
    %843 = vmatprep.subr.mxu0 0.0
    %844 = vmatpush1.msra.mxu0 0.0
    %845 = vmatprep.subr.mxu0 0.0
    %846 = vmatpush1.msra.mxu0 0.0
    %847 = vmatprep.subr.mxu0 0.0
    %848 = vmatpush1.msra.mxu0 0.0
    %849 = vmatprep.subr.mxu0 0.0
    %850 = vmatpush1.msra.mxu0 0.0
    %851 = vmatprep.subr.mxu0 0.0
    %852 = vmatpush1.msra.mxu0 0.0
    %853 = vmatprep.subr.mxu0 0.0
    %854 = vmatpush1.msra.mxu0 0.0
    %855 = vmatprep.subr.mxu0 0.0
    %856 = vmatpush1.msra.mxu0 0.0
    %857 = vmatprep.subr.mxu0 0.0
    %858 = vmatpush1.msra.mxu0 0.0
    %859 = vmatprep.mubr.f32.mxu0 %v748
    %860 = vmatmul.mubr.f32.gmra.mrb[0].mxu0 %v713
    %v861 = vpop.f32.mrb[0].mxu0
    %v862 = vadd.f32 0.0, %v861
    %v863 = vpop.f32.mrb[0].mxu0
    %864 = vmatprep.mubr.f32.mxu0 %v751
    %865 = vmatmul.mubr.f32.gmra.mrb[0].mxu0 %v714
    %v866 = vpop.f32.mrb[0].mxu0
    %v867 = vadd.f32 0.0, %v866
    %v868 = vpop.f32.mrb[0].mxu0
    %869 = vmatprep.mubr.f32.mxu0 %v754
    %870 = vmatmul.mubr.f32.gmra.mrb[0].mxu0 %v715
    %v871 = vpop.f32.mrb[0].mxu0
    %v872 = vadd.f32 0.0, %v871
    %v873 = vpop.f32.mrb[0].mxu0
    %874 = vmatprep.mubr.f32.mxu0 %v757
    %875 = vmatmul.mubr.f32.gmra.mrb[0].mxu0 %v716
    %v876 = vpop.f32.mrb[0].mxu0
    %v877 = vadd.f32 0.0, %v876
    %v878 = vpop.f32.mrb[0].mxu0
    %879 = vmatprep.mubr.f32.mxu0 %v760
    %880 = vmatmul.mubr.f32.gmra.mrb[0].mxu0 %v717
    %v881 = vpop.f32.mrb[0].mxu0
    %v882 = vadd.f32 0.0, %v881
    %v883 = vpop.f32.mrb[0].mxu0
    %884 = vmatprep.mubr.f32.mxu0 %v763
    %885 = vmatmul.mubr.f32.gmra.mrb[0].mxu0 %v718
    %v886 = vpop.f32.mrb[0].mxu0
    %v887 = vadd.f32 0.0, %v886
    %v888 = vpop.f32.mrb[0].mxu0
    %889 = vmatprep.mubr.f32.mxu0 %v766
    %890 = vmatmul.mubr.f32.gmra.mrb[0].mxu0 %v719
    %v891 = vpop.f32.mrb[0].mxu0
    %v892 = vadd.f32 0.0, %v891
    %v893 = vpop.f32.mrb[0].mxu0
    %894 = vmatprep.mubr.f32.mxu0 %v769
    %895 = vmatmul.mubr.f32.gmra.mrb[0].mxu0 %v720
    %v896 = vpop.f32.mrb[0].mxu0
    %v897 = vadd.f32 0.0, %v896
    %v898 = vpop.f32.mrb[0].mxu0
    %899 = vmatprep.mubr.f32.mxu0 %v772
    %900 = vmatmul.mubr.f32.gmra.mrb[0].mxu0 %v721
    %v901 = vpop.f32.mrb[0].mxu0
    %v902 = vadd.f32 0.0, %v901
    %v903 = vpop.f32.mrb[0].mxu0
    %904 = vmatprep.mubr.f32.mxu0 %v775
    %905 = vmatmul.mubr.f32.gmra.mrb[0].mxu0 %v722
    %v906 = vpop.f32.mrb[0].mxu0
    %v907 = vadd.f32 0.0, %v906
    %v908 = vpop.f32.mrb[0].mxu0
    %909 = vmatprep.mubr.f32.mxu0 %v778
    %910 = vmatmul.mubr.f32.gmra.mrb[0].mxu0 %v723
    %v911 = vpop.f32.mrb[0].mxu0
    %v912 = vadd.f32 0.0, %v911
    %v913 = vpop.f32.mrb[0].mxu0
    %914 = vmatprep.mubr.f32.mxu0 %v781
    %915 = vmatmul.mubr.f32.gmra.mrb[0].mxu0 %v724
    %v916 = vpop.f32.mrb[0].mxu0
    %v917 = vadd.f32 0.0, %v916
    %v918 = vpop.f32.mrb[0].mxu0
    %919 = vmatprep.mubr.f32.mxu0 %v784
    %920 = vmatmul.mubr.f32.gmra.mrb[0].mxu0 %v725
    %v921 = vpop.f32.mrb[0].mxu0
    %v922 = vadd.f32 0.0, %v921
    %v923 = vpop.f32.mrb[0].mxu0
    %924 = vmatprep.mubr.f32.mxu0 %v787
    %925 = vmatmul.mubr.f32.gmra.mrb[0].mxu0 %v726
    %v926 = vpop.f32.mrb[0].mxu0
    %v927 = vadd.f32 0.0, %v926
    %v928 = vpop.f32.mrb[0].mxu0
    %929 = vmatprep.mubr.f32.mxu0 %v790
    %930 = vmatmul.mubr.f32.gmra.mrb[0].mxu0 %v727
    %v931 = vpop.f32.mrb[0].mxu0
    %v932 = vadd.f32 0.0, %v931
    %v933 = vpop.f32.mrb[0].mxu0
    %934 = vmatprep.mubr.f32.mxu0 %v793
    %935 = vmatmul.mubr.f32.gmra.mrb[0].mxu0 %v728
    %v936 = vpop.f32.mrb[0].mxu0
    %v937 = vadd.f32 0.0, %v936
    %v938 = vpop.f32.mrb[0].mxu0
    %939 = vdwg.mxu0
    %v940 = vsel %vm610, %v862, 0.0
    %v941 = vsel %vm610, %v867, 0.0
    %v942 = vadd.f32 %v940, %v941
    %v943 = vsel %vm610, %v872, 0.0
    %v944 = vadd.f32 %v942, %v943
    %v945 = vsel %vm610, %v877, 0.0
    %v946 = vadd.f32 %v944, %v945
    %v947 = vsel %vm610, %v882, 0.0
    %v948 = vadd.f32 %v946, %v947
    %v949 = vsel %vm610, %v887, 0.0
    %v950 = vadd.f32 %v948, %v949
    %v951 = vsel %vm610, %v892, 0.0
    %v952 = vadd.f32 %v950, %v951
    %v953 = vsel %vm610, %v897, 0.0
    %v954 = vadd.f32 %v952, %v953
    %v955 = vsel %vm610, %v902, 0.0
    %v956 = vadd.f32 %v954, %v955
    %v957 = vsel %vm610, %v907, 0.0
    %v958 = vadd.f32 %v956, %v957
    %v959 = vsel %vm610, %v912, 0.0
    %v960 = vadd.f32 %v958, %v959
    %v961 = vsel %vm610, %v917, 0.0
    %v962 = vadd.f32 %v960, %v961
    %v963 = vsel %vm610, %v922, 0.0
    %v964 = vadd.f32 %v962, %v963
    %v965 = vsel %vm610, %v927, 0.0
    %v966 = vadd.f32 %v964, %v965
    %v967 = vsel %vm610, %v932, 0.0
    %v968 = vadd.f32 %v966, %v967
    %v969 = vsel %vm610, %v937, 0.0
    %v970 = vadd.f32 %v968, %v969
    %v971 = vrot.slane %v970, 4
    %v972 = vadd.f32 %v970, %v971
    %v973 = vrot.slane %v972, 2
    %v974 = vadd.f32 %v972, %v973
    %v975 = vrot.slane %v974, 1
    %v976 = vadd.f32 %v974, %v975
    %v977 = vrcp.pop 128.0
    %v978 = vmul.f32 %v976, %v977
    %v979 = vsub.f32 %v862, %v978
    %v980 = vsub.f32 %v867, %v978
    %v981 = vsub.f32 %v872, %v978
    %v982 = vsub.f32 %v877, %v978
    %v983 = vsub.f32 %v882, %v978
    %v984 = vsub.f32 %v887, %v978
    %v985 = vsub.f32 %v892, %v978
    %v986 = vsub.f32 %v897, %v978
    %v987 = vsub.f32 %v902, %v978
    %v988 = vsub.f32 %v907, %v978
    %v989 = vsub.f32 %v912, %v978
    %v990 = vsub.f32 %v917, %v978
    %v991 = vsub.f32 %v922, %v978
    %v992 = vsub.f32 %v927, %v978
    %v993 = vsub.f32 %v932, %v978
    %v994 = vsub.f32 %v937, %v978
    %v995 = vmul.f32 %v979, %v979
    %v996 = vmul.f32 %v980, %v980
    %v997 = vmul.f32 %v981, %v981
    %v998 = vmul.f32 %v982, %v982
    %v999 = vmul.f32 %v983, %v983
    %v1000 = vmul.f32 %v984, %v984
    %v1001 = vmul.f32 %v985, %v985
    %v1002 = vmul.f32 %v986, %v986
    %v1003 = vmul.f32 %v987, %v987
    %v1004 = vmul.f32 %v988, %v988
    %v1005 = vmul.f32 %v989, %v989
    %v1006 = vmul.f32 %v990, %v990
    %v1007 = vmul.f32 %v991, %v991
    %v1008 = vmul.f32 %v992, %v992
    %v1009 = vmul.f32 %v993, %v993
    %v1010 = vmul.f32 %v994, %v994
    %v1011 = vsel %vm610, %v995, 0.0
    %v1012 = vsel %vm610, %v996, 0.0
    %v1013 = vadd.f32 %v1011, %v1012
    %v1014 = vsel %vm610, %v997, 0.0
    %v1015 = vadd.f32 %v1013, %v1014
    %v1016 = vsel %vm610, %v998, 0.0
    %v1017 = vadd.f32 %v1015, %v1016
    %v1018 = vsel %vm610, %v999, 0.0
    %v1019 = vadd.f32 %v1017, %v1018
    %v1020 = vsel %vm610, %v1000, 0.0
    %v1021 = vadd.f32 %v1019, %v1020
    %v1022 = vsel %vm610, %v1001, 0.0
    %v1023 = vadd.f32 %v1021, %v1022
    %v1024 = vsel %vm610, %v1002, 0.0
    %v1025 = vadd.f32 %v1023, %v1024
    %v1026 = vsel %vm610, %v1003, 0.0
    %v1027 = vadd.f32 %v1025, %v1026
    %v1028 = vsel %vm610, %v1004, 0.0
    %v1029 = vadd.f32 %v1027, %v1028
    %v1030 = vsel %vm610, %v1005, 0.0
    %v1031 = vadd.f32 %v1029, %v1030
    %v1032 = vsel %vm610, %v1006, 0.0
    %v1033 = vadd.f32 %v1031, %v1032
    %v1034 = vsel %vm610, %v1007, 0.0
    %v1035 = vadd.f32 %v1033, %v1034
    %v1036 = vsel %vm610, %v1008, 0.0
    %v1037 = vadd.f32 %v1035, %v1036
    %v1038 = vsel %vm610, %v1009, 0.0
    %v1039 = vadd.f32 %v1037, %v1038
    %v1040 = vsel %vm610, %v1010, 0.0
    %v1041 = vadd.f32 %v1039, %v1040
    %v1042 = vrot.slane %v1041, 4
    %v1043 = vadd.f32 %v1041, %v1042
    %v1044 = vrot.slane %v1043, 2
    %v1045 = vadd.f32 %v1043, %v1044
    %v1046 = vrot.slane %v1045, 1
    %v1047 = vadd.f32 %v1045, %v1046
    %v1048 = vmul.f32 %v1047, %v977
    %v1049 = vadd.f32 %v1048, 1e-05
    %v1050 = vrsqrt.pop %v1049
    %v1051 = vmul.f32 %v15, %v1050
    %v1052 = vlaneseq
    %v1053 = vshrl.u32 %v1052, 7
    %v1054 = vsub.s32 0, %v1053
    %v1055 = vrot.slane %v1051, %v1054
    %v1056 = vmul.f32 %v979, %v1055
    %v1057 = vmul.f32 %v980, %v1055
    %v1058 = vmul.f32 %v981, %v1055
    %v1059 = vmul.f32 %v982, %v1055
    %v1060 = vmul.f32 %v983, %v1055
    %v1061 = vmul.f32 %v984, %v1055
    %v1062 = vmul.f32 %v985, %v1055
    %v1063 = vmul.f32 %v986, %v1055
    %v1064 = vmul.f32 %v987, %v1055
    %v1065 = vmul.f32 %v988, %v1055
    %v1066 = vmul.f32 %v989, %v1055
    %v1067 = vmul.f32 %v990, %v1055
    %v1068 = vmul.f32 %v991, %v1055
    %v1069 = vmul.f32 %v992, %v1055
    %v1070 = vmul.f32 %v993, %v1055
    %v1071 = vmul.f32 %v994, %v1055
    %v1072 = vlaneseq
    %v1073 = vshrl.u32 %v1072, 7
    %v1074 = vsub.s32 1, %v1073
    %v1075 = vrot.slane %v15, %v1074
    %v1076 = vadd.f32 %v1056, %v1075
    %v1077 = vadd.f32 %v1057, %v1075
    %v1078 = vadd.f32 %v1058, %v1075
    %v1079 = vadd.f32 %v1059, %v1075
    %v1080 = vadd.f32 %v1060, %v1075
    %v1081 = vadd.f32 %v1061, %v1075
    %v1082 = vadd.f32 %v1062, %v1075
    %v1083 = vadd.f32 %v1063, %v1075
    %v1084 = vadd.f32 %v1064, %v1075
    %v1085 = vadd.f32 %v1065, %v1075
    %v1086 = vadd.f32 %v1066, %v1075
    %v1087 = vadd.f32 %v1067, %v1075
    %v1088 = vadd.f32 %v1068, %v1075
    %v1089 = vadd.f32 %v1069, %v1075
    %v1090 = vadd.f32 %v1070, %v1075
    %v1091 = vadd.f32 %v1071, %v1075
    %v1092 = vmax.f32 %v1076, 0.0
    %v1093 = vmax.f32 %v1077, 0.0
    %v1094 = vmax.f32 %v1078, 0.0
    %v1095 = vmax.f32 %v1079, 0.0
    %v1096 = vmax.f32 %v1080, 0.0
    %v1097 = vmax.f32 %v1081, 0.0
    %v1098 = vmax.f32 %v1082, 0.0
    %v1099 = vmax.f32 %v1083, 0.0
    %v1100 = vmax.f32 %v1084, 0.0
    %v1101 = vmax.f32 %v1085, 0.0
    %v1102 = vmax.f32 %v1086, 0.0
    %v1103 = vmax.f32 %v1087, 0.0
    %v1104 = vmax.f32 %v1088, 0.0
    %v1105 = vmax.f32 %v1089, 0.0
    %v1106 = vmax.f32 %v1090, 0.0
    %v1107 = vmax.f32 %v1091, 0.0
    %v1108 = vsel %vm610, %v1092, -inf
    %v1109 = vsel %vm610, %v1093, -inf
    %v1110 = vmax.f32 %v1108, %v1109
    %v1111 = vsel %vm610, %v1094, -inf
    %v1112 = vsel %vm610, %v1095, -inf
    %v1113 = vmax.f32 %v1111, %v1112
    %v1114 = vsel %vm610, %v1096, -inf
    %v1115 = vsel %vm610, %v1097, -inf
    %v1116 = vmax.f32 %v1114, %v1115
    %v1117 = vsel %vm610, %v1098, -inf
    %v1118 = vsel %vm610, %v1099, -inf
    %v1119 = vmax.f32 %v1117, %v1118
    %v1120 = vsel %vm610, %v1100, -inf
    %v1121 = vsel %vm610, %v1101, -inf
    %v1122 = vmax.f32 %v1120, %v1121
    %v1123 = vsel %vm610, %v1102, -inf
    %v1124 = vsel %vm610, %v1103, -inf
    %v1125 = vmax.f32 %v1123, %v1124
    %v1126 = vsel %vm610, %v1104, -inf
    %v1127 = vsel %vm610, %v1105, -inf
    %v1128 = vmax.f32 %v1126, %v1127
    %v1129 = vsel %vm610, %v1106, -inf
    %v1130 = vsel %vm610, %v1107, -inf
    %v1131 = vmax.f32 %v1129, %v1130
    %v1140 = vcombine.high %v1110, %v1110
    %v1142 = vunpack.c.l.s4 1983009808
    %v1143 = vunpack.c.0.s8 %v1142
    %v1144 = vlaneseq
    %v1145 = vshrl.u32 %v1144, 7
    %v1146 = vsub.s32 %v1143, %v1145
    %v1147 = vrot.slane %v1110, %v1146
    %v1149 = vunpack.c.l.s4 1983009808
    %v1150 = vunpack.c.0.s8 %v1149
    %v1151 = vlaneseq
    %v1152 = vshrl.u32 %v1151, 7
    %v1153 = vsub.s32 %v1150, %v1152
    %v1154 = vrot.slane %v1140, %v1153
    %v1155 = vcombine.high %v1147, %v1147
    %v1156 = vcombine.high %v1154, %v1154
    %v1157 = vcombine.high %v1113, %v1113
    %v1159 = vunpack.c.l.s4 1983009808
    %v1160 = vunpack.c.0.s8 %v1159
    %v1161 = vlaneseq
    %v1162 = vshrl.u32 %v1161, 7
    %v1163 = vsub.s32 %v1160, %v1162
    %v1164 = vrot.slane %v1113, %v1163
    %v1166 = vunpack.c.l.s4 1983009808
    %v1167 = vunpack.c.0.s8 %v1166
    %v1168 = vlaneseq
    %v1169 = vshrl.u32 %v1168, 7
    %v1170 = vsub.s32 %v1167, %v1169
    %v1171 = vrot.slane %v1157, %v1170
    %v1172 = vcombine.high %v1164, %v1164
    %v1173 = vcombine.high %v1171, %v1171
    %v1174 = vcombine.high %v1116, %v1116
    %v1176 = vunpack.c.l.s4 1983009808
    %v1177 = vunpack.c.0.s8 %v1176
    %v1178 = vlaneseq
    %v1179 = vshrl.u32 %v1178, 7
    %v1180 = vsub.s32 %v1177, %v1179
    %v1181 = vrot.slane %v1116, %v1180
    %v1183 = vunpack.c.l.s4 1983009808
    %v1184 = vunpack.c.0.s8 %v1183
    %v1185 = vlaneseq
    %v1186 = vshrl.u32 %v1185, 7
    %v1187 = vsub.s32 %v1184, %v1186
    %v1188 = vrot.slane %v1174, %v1187
    %v1189 = vcombine.high %v1181, %v1181
    %v1190 = vcombine.high %v1188, %v1188
    %v1191 = vcombine.high %v1119, %v1119
    %v1193 = vunpack.c.l.s4 1983009808
    %v1194 = vunpack.c.0.s8 %v1193
    %v1195 = vlaneseq
    %v1196 = vshrl.u32 %v1195, 7
    %v1197 = vsub.s32 %v1194, %v1196
    %v1198 = vrot.slane %v1119, %v1197
    %v1200 = vunpack.c.l.s4 1983009808
    %v1201 = vunpack.c.0.s8 %v1200
    %v1202 = vlaneseq
    %v1203 = vshrl.u32 %v1202, 7
    %v1204 = vsub.s32 %v1201, %v1203
    %v1205 = vrot.slane %v1191, %v1204
    %v1206 = vcombine.high %v1198, %v1198
    %v1207 = vcombine.high %v1205, %v1205
    %v1208 = vcombine.high %v1122, %v1122
    %v1210 = vunpack.c.l.s4 1983009808
    %v1211 = vunpack.c.0.s8 %v1210
    %v1212 = vlaneseq
    %v1213 = vshrl.u32 %v1212, 7
    %v1214 = vsub.s32 %v1211, %v1213
    %v1215 = vrot.slane %v1122, %v1214
    %v1217 = vunpack.c.l.s4 1983009808
    %v1218 = vunpack.c.0.s8 %v1217
    %v1219 = vlaneseq
    %v1220 = vshrl.u32 %v1219, 7
    %v1221 = vsub.s32 %v1218, %v1220
    %v1222 = vrot.slane %v1208, %v1221
    %v1223 = vcombine.high %v1215, %v1215
    %v1224 = vcombine.high %v1222, %v1222
    %v1225 = vcombine.high %v1125, %v1125
    %v1227 = vunpack.c.l.s4 1983009808
    %v1228 = vunpack.c.0.s8 %v1227
    %v1229 = vlaneseq
    %v1230 = vshrl.u32 %v1229, 7
    %v1231 = vsub.s32 %v1228, %v1230
    %v1232 = vrot.slane %v1125, %v1231
    %v1234 = vunpack.c.l.s4 1983009808
    %v1235 = vunpack.c.0.s8 %v1234
    %v1236 = vlaneseq
    %v1237 = vshrl.u32 %v1236, 7
    %v1238 = vsub.s32 %v1235, %v1237
    %v1239 = vrot.slane %v1225, %v1238
    %v1240 = vcombine.high %v1232, %v1232
    %v1241 = vcombine.high %v1239, %v1239
    %v1242 = vcombine.high %v1128, %v1128
    %v1244 = vunpack.c.l.s4 1983009808
    %v1245 = vunpack.c.0.s8 %v1244
    %v1246 = vlaneseq
    %v1247 = vshrl.u32 %v1246, 7
    %v1248 = vsub.s32 %v1245, %v1247
    %v1249 = vrot.slane %v1128, %v1248
    %v1251 = vunpack.c.l.s4 1983009808
    %v1252 = vunpack.c.0.s8 %v1251
    %v1253 = vlaneseq
    %v1254 = vshrl.u32 %v1253, 7
    %v1255 = vsub.s32 %v1252, %v1254
    %v1256 = vrot.slane %v1242, %v1255
    %v1257 = vcombine.high %v1249, %v1249
    %v1258 = vcombine.high %v1256, %v1256
    %v1259 = vcombine.high %v1131, %v1131
    %v1261 = vunpack.c.l.s4 1983009808
    %v1262 = vunpack.c.0.s8 %v1261
    %v1263 = vlaneseq
    %v1264 = vshrl.u32 %v1263, 7
    %v1265 = vsub.s32 %v1262, %v1264
    %v1266 = vrot.slane %v1131, %v1265
    %v1268 = vunpack.c.l.s4 1983009808
    %v1269 = vunpack.c.0.s8 %v1268
    %v1270 = vlaneseq
    %v1271 = vshrl.u32 %v1270, 7
    %v1272 = vsub.s32 %v1269, %v1271
    %v1273 = vrot.slane %v1259, %v1272
    %v1274 = vcombine.high %v1266, %v1266
    %v1275 = vcombine.high %v1273, %v1273
    %vm1308 = vcmask 123904
    %v1309 = vsel %vm1308, %v1147, -inf
    %v1310 = vrot.slane %v1309, 4
    %v1311 = vmax.f32 %v1309, %v1310
    %v1312 = vrot.slane %v1311, 2
    %v1313 = vmax.f32 %v1311, %v1312
    %v1314 = vrot.slane %v1313, 1
    %v1315 = vmax.f32 %v1313, %v1314
    %v1316 = vsel %vm1308, %v1155, -inf
    %v1317 = vrot.slane %v1316, 4
    %v1318 = vmax.f32 %v1316, %v1317
    %v1319 = vrot.slane %v1318, 2
    %v1320 = vmax.f32 %v1318, %v1319
    %v1321 = vrot.slane %v1320, 1
    %v1322 = vmax.f32 %v1320, %v1321
    %v1323 = vsel %vm1308, %v1154, -inf
    %v1324 = vrot.slane %v1323, 4
    %v1325 = vmax.f32 %v1323, %v1324
    %v1326 = vrot.slane %v1325, 2
    %v1327 = vmax.f32 %v1325, %v1326
    %v1328 = vrot.slane %v1327, 1
    %v1329 = vmax.f32 %v1327, %v1328
    %v1330 = vsel %vm1308, %v1156, -inf
    %v1331 = vrot.slane %v1330, 4
    %v1332 = vmax.f32 %v1330, %v1331
    %v1333 = vrot.slane %v1332, 2
    %v1334 = vmax.f32 %v1332, %v1333
    %v1335 = vrot.slane %v1334, 1
    %v1336 = vmax.f32 %v1334, %v1335
    %v1337 = vsel %vm1308, %v1164, -inf
    %v1338 = vrot.slane %v1337, 4
    %v1339 = vmax.f32 %v1337, %v1338
    %v1340 = vrot.slane %v1339, 2
    %v1341 = vmax.f32 %v1339, %v1340
    %v1342 = vrot.slane %v1341, 1
    %v1343 = vmax.f32 %v1341, %v1342
    %v1344 = vsel %vm1308, %v1172, -inf
    %v1345 = vrot.slane %v1344, 4
    %v1346 = vmax.f32 %v1344, %v1345
    %v1347 = vrot.slane %v1346, 2
    %v1348 = vmax.f32 %v1346, %v1347
    %v1349 = vrot.slane %v1348, 1
    %v1350 = vmax.f32 %v1348, %v1349
    %v1351 = vsel %vm1308, %v1171, -inf
    %v1352 = vrot.slane %v1351, 4
    %v1353 = vmax.f32 %v1351, %v1352
    %v1354 = vrot.slane %v1353, 2
    %v1355 = vmax.f32 %v1353, %v1354
    %v1356 = vrot.slane %v1355, 1
    %v1357 = vmax.f32 %v1355, %v1356
    %v1358 = vsel %vm1308, %v1173, -inf
    %v1359 = vrot.slane %v1358, 4
    %v1360 = vmax.f32 %v1358, %v1359
    %v1361 = vrot.slane %v1360, 2
    %v1362 = vmax.f32 %v1360, %v1361
    %v1363 = vrot.slane %v1362, 1
    %v1364 = vmax.f32 %v1362, %v1363
    %v1365 = vsel %vm1308, %v1181, -inf
    %v1366 = vrot.slane %v1365, 4
    %v1367 = vmax.f32 %v1365, %v1366
    %v1368 = vrot.slane %v1367, 2
    %v1369 = vmax.f32 %v1367, %v1368
    %v1370 = vrot.slane %v1369, 1
    %v1371 = vmax.f32 %v1369, %v1370
    %v1372 = vsel %vm1308, %v1189, -inf
    %v1373 = vrot.slane %v1372, 4
    %v1374 = vmax.f32 %v1372, %v1373
    %v1375 = vrot.slane %v1374, 2
    %v1376 = vmax.f32 %v1374, %v1375
    %v1377 = vrot.slane %v1376, 1
    %v1378 = vmax.f32 %v1376, %v1377
    %v1379 = vsel %vm1308, %v1188, -inf
    %v1380 = vrot.slane %v1379, 4
    %v1381 = vmax.f32 %v1379, %v1380
    %v1382 = vrot.slane %v1381, 2
    %v1383 = vmax.f32 %v1381, %v1382
    %v1384 = vrot.slane %v1383, 1
    %v1385 = vmax.f32 %v1383, %v1384
    %v1386 = vsel %vm1308, %v1190, -inf
    %v1387 = vrot.slane %v1386, 4
    %v1388 = vmax.f32 %v1386, %v1387
    %v1389 = vrot.slane %v1388, 2
    %v1390 = vmax.f32 %v1388, %v1389
    %v1391 = vrot.slane %v1390, 1
    %v1392 = vmax.f32 %v1390, %v1391
    %v1393 = vsel %vm1308, %v1198, -inf
    %v1394 = vrot.slane %v1393, 4
    %v1395 = vmax.f32 %v1393, %v1394
    %v1396 = vrot.slane %v1395, 2
    %v1397 = vmax.f32 %v1395, %v1396
    %v1398 = vrot.slane %v1397, 1
    %v1399 = vmax.f32 %v1397, %v1398
    %v1400 = vsel %vm1308, %v1206, -inf
    %v1401 = vrot.slane %v1400, 4
    %v1402 = vmax.f32 %v1400, %v1401
    %v1403 = vrot.slane %v1402, 2
    %v1404 = vmax.f32 %v1402, %v1403
    %v1405 = vrot.slane %v1404, 1
    %v1406 = vmax.f32 %v1404, %v1405
    %v1407 = vsel %vm1308, %v1205, -inf
    %v1408 = vrot.slane %v1407, 4
    %v1409 = vmax.f32 %v1407, %v1408
    %v1410 = vrot.slane %v1409, 2
    %v1411 = vmax.f32 %v1409, %v1410
    %v1412 = vrot.slane %v1411, 1
    %v1413 = vmax.f32 %v1411, %v1412
    %v1414 = vsel %vm1308, %v1207, -inf
    %v1415 = vrot.slane %v1414, 4
    %v1416 = vmax.f32 %v1414, %v1415
    %v1417 = vrot.slane %v1416, 2
    %v1418 = vmax.f32 %v1416, %v1417
    %v1419 = vrot.slane %v1418, 1
    %v1420 = vmax.f32 %v1418, %v1419
    %v1421 = vsel %vm1308, %v1215, -inf
    %v1422 = vrot.slane %v1421, 4
    %v1423 = vmax.f32 %v1421, %v1422
    %v1424 = vrot.slane %v1423, 2
    %v1425 = vmax.f32 %v1423, %v1424
    %v1426 = vrot.slane %v1425, 1
    %v1427 = vmax.f32 %v1425, %v1426
    %v1428 = vsel %vm1308, %v1223, -inf
    %v1429 = vrot.slane %v1428, 4
    %v1430 = vmax.f32 %v1428, %v1429
    %v1431 = vrot.slane %v1430, 2
    %v1432 = vmax.f32 %v1430, %v1431
    %v1433 = vrot.slane %v1432, 1
    %v1434 = vmax.f32 %v1432, %v1433
    %v1435 = vsel %vm1308, %v1222, -inf
    %v1436 = vrot.slane %v1435, 4
    %v1437 = vmax.f32 %v1435, %v1436
    %v1438 = vrot.slane %v1437, 2
    %v1439 = vmax.f32 %v1437, %v1438
    %v1440 = vrot.slane %v1439, 1
    %v1441 = vmax.f32 %v1439, %v1440
    %v1442 = vsel %vm1308, %v1224, -inf
    %v1443 = vrot.slane %v1442, 4
    %v1444 = vmax.f32 %v1442, %v1443
    %v1445 = vrot.slane %v1444, 2
    %v1446 = vmax.f32 %v1444, %v1445
    %v1447 = vrot.slane %v1446, 1
    %v1448 = vmax.f32 %v1446, %v1447
    %v1449 = vsel %vm1308, %v1232, -inf
    %v1450 = vrot.slane %v1449, 4
    %v1451 = vmax.f32 %v1449, %v1450
    %v1452 = vrot.slane %v1451, 2
    %v1453 = vmax.f32 %v1451, %v1452
    %v1454 = vrot.slane %v1453, 1
    %v1455 = vmax.f32 %v1453, %v1454
    %v1456 = vsel %vm1308, %v1240, -inf
    %v1457 = vrot.slane %v1456, 4
    %v1458 = vmax.f32 %v1456, %v1457
    %v1459 = vrot.slane %v1458, 2
    %v1460 = vmax.f32 %v1458, %v1459
    %v1461 = vrot.slane %v1460, 1
    %v1462 = vmax.f32 %v1460, %v1461
    %v1463 = vsel %vm1308, %v1239, -inf
    %v1464 = vrot.slane %v1463, 4
    %v1465 = vmax.f32 %v1463, %v1464
    %v1466 = vrot.slane %v1465, 2
    %v1467 = vmax.f32 %v1465, %v1466
    %v1468 = vrot.slane %v1467, 1
    %v1469 = vmax.f32 %v1467, %v1468
    %v1470 = vsel %vm1308, %v1241, -inf
    %v1471 = vrot.slane %v1470, 4
    %v1472 = vmax.f32 %v1470, %v1471
    %v1473 = vrot.slane %v1472, 2
    %v1474 = vmax.f32 %v1472, %v1473
    %v1475 = vrot.slane %v1474, 1
    %v1476 = vmax.f32 %v1474, %v1475
    %v1477 = vsel %vm1308, %v1249, -inf
    %v1478 = vrot.slane %v1477, 4
    %v1479 = vmax.f32 %v1477, %v1478
    %v1480 = vrot.slane %v1479, 2
    %v1481 = vmax.f32 %v1479, %v1480
    %v1482 = vrot.slane %v1481, 1
    %v1483 = vmax.f32 %v1481, %v1482
    %v1484 = vsel %vm1308, %v1257, -inf
    %v1485 = vrot.slane %v1484, 4
    %v1486 = vmax.f32 %v1484, %v1485
    %v1487 = vrot.slane %v1486, 2
    %v1488 = vmax.f32 %v1486, %v1487
    %v1489 = vrot.slane %v1488, 1
    %v1490 = vmax.f32 %v1488, %v1489
    %v1491 = vsel %vm1308, %v1256, -inf
    %v1492 = vrot.slane %v1491, 4
    %v1493 = vmax.f32 %v1491, %v1492
    %v1494 = vrot.slane %v1493, 2
    %v1495 = vmax.f32 %v1493, %v1494
    %v1496 = vrot.slane %v1495, 1
    %v1497 = vmax.f32 %v1495, %v1496
    %v1498 = vsel %vm1308, %v1258, -inf
    %v1499 = vrot.slane %v1498, 4
    %v1500 = vmax.f32 %v1498, %v1499
    %v1501 = vrot.slane %v1500, 2
    %v1502 = vmax.f32 %v1500, %v1501
    %v1503 = vrot.slane %v1502, 1
    %v1504 = vmax.f32 %v1502, %v1503
    %v1505 = vsel %vm1308, %v1266, -inf
    %v1506 = vrot.slane %v1505, 4
    %v1507 = vmax.f32 %v1505, %v1506
    %v1508 = vrot.slane %v1507, 2
    %v1509 = vmax.f32 %v1507, %v1508
    %v1510 = vrot.slane %v1509, 1
    %v1511 = vmax.f32 %v1509, %v1510
    %v1512 = vsel %vm1308, %v1274, -inf
    %v1513 = vrot.slane %v1512, 4
    %v1514 = vmax.f32 %v1512, %v1513
    %v1515 = vrot.slane %v1514, 2
    %v1516 = vmax.f32 %v1514, %v1515
    %v1517 = vrot.slane %v1516, 1
    %v1518 = vmax.f32 %v1516, %v1517
    %v1519 = vsel %vm1308, %v1273, -inf
    %v1520 = vrot.slane %v1519, 4
    %v1521 = vmax.f32 %v1519, %v1520
    %v1522 = vrot.slane %v1521, 2
    %v1523 = vmax.f32 %v1521, %v1522
    %v1524 = vrot.slane %v1523, 1
    %v1525 = vmax.f32 %v1523, %v1524
    %v1526 = vsel %vm1308, %v1275, -inf
    %v1527 = vrot.slane %v1526, 4
    %v1528 = vmax.f32 %v1526, %v1527
    %v1529 = vrot.slane %v1528, 2
    %v1530 = vmax.f32 %v1528, %v1529
    %v1531 = vrot.slane %v1530, 1
    %v1532 = vmax.f32 %v1530, %v1531
    %1533 = vst.msk [vmem:[#allocation2] sm:$0xff] %vm610, 0.0
    %1534 = vst.msk [vmem:[#allocation2 + $0x8] sm:$0xff] %vm610, 0.0
    %1535 = vst.msk [vmem:[#allocation2 + $0x10] sm:$0xff] %vm610, 0.0
    %1536 = vst.msk [vmem:[#allocation2 + $0x18] sm:$0xff] %vm610, 0.0
    %1537 = vst.msk [vmem:[#allocation2 + $0x20] sm:$0xff] %vm610, 0.0
    %1538 = vst.msk [vmem:[#allocation2 + $0x28] sm:$0xff] %vm610, 0.0
    %1539 = vst.msk [vmem:[#allocation2 + $0x30] sm:$0xff] %vm610, 0.0
    %1540 = vst.msk [vmem:[#allocation2 + $0x38] sm:$0xff] %vm610, 0.0
    %1541 = vst.msk [vmem:[#allocation2 + $0x40] sm:$0xff] %vm610, 0.0
    %1542 = vst.msk [vmem:[#allocation2 + $0x48] sm:$0xff] %vm610, 0.0
    %1543 = vst.msk [vmem:[#allocation2 + $0x50] sm:$0xff] %vm610, 0.0
    %1544 = vst.msk [vmem:[#allocation2 + $0x58] sm:$0xff] %vm610, 0.0
    %vm1577 = vcmask 1041409
    %v1578 = vsel %vm1577, %v1322, %v1315
    %vm1579 = vcmask 1042434
    %v1580 = vsel %vm1579, %v1329, %v1578
    %vm1581 = vcmask 1043459
    %v1582 = vsel %vm1581, %v1336, %v1580
    %v1583 = vsel %vm1577, %v1350, %v1343
    %v1584 = vsel %vm1579, %v1357, %v1583
    %v1585 = vsel %vm1581, %v1364, %v1584
    %v1586 = vsel %vm1577, %v1378, %v1371
    %v1587 = vsel %vm1579, %v1385, %v1586
    %v1588 = vsel %vm1581, %v1392, %v1587
    %v1589 = vsel %vm1577, %v1406, %v1399
    %v1590 = vsel %vm1579, %v1413, %v1589
    %v1591 = vsel %vm1581, %v1420, %v1590
    %v1592 = vsel %vm1577, %v1434, %v1427
    %v1593 = vsel %vm1579, %v1441, %v1592
    %v1594 = vsel %vm1581, %v1448, %v1593
    %v1595 = vsel %vm1577, %v1462, %v1455
    %v1596 = vsel %vm1579, %v1469, %v1595
    %v1597 = vsel %vm1581, %v1476, %v1596
    %v1598 = vsel %vm1577, %v1490, %v1483
    %v1599 = vsel %vm1579, %v1497, %v1598
    %v1600 = vsel %vm1581, %v1504, %v1599
    %v1601 = vsel %vm1577, %v1518, %v1511
    %v1602 = vsel %vm1579, %v1525, %v1601
    %v1603 = vsel %vm1581, %v1532, %v1602
    %s1612 = scalar_lea.vmem [#allocation2], 8
    %vm1613 = vcmask 125952
    %1614 = vst.msk [vmem:[%s1612 + $0x1] sm:$0xf] %vm1613, %v1582
    %1615 = vst.msk [vmem:[%s1612 + $0x9] sm:$0xf] %vm1613, %v1585
    %1616 = vst.msk [vmem:[%s1612 + $0x11] sm:$0xf] %vm1613, %v1588
    %1617 = vst.msk [vmem:[%s1612 + $0x19] sm:$0xf] %vm1613, %v1591
    %1618 = vst.msk [vmem:[%s1612 + $0x31] sm:$0xf] %vm1613, %v1594
    %1619 = vst.msk [vmem:[%s1612 + $0x39] sm:$0xf] %vm1613, %v1597
    %1620 = vst.msk [vmem:[%s1612 + $0x41] sm:$0xf] %vm1613, %v1600
    %1621 = vst.msk [vmem:[%s1612 + $0x49] sm:$0xf] %vm1613, %v1603
    %v1622 = vld [vmem:[#allocation2] sm:$0xf]
    %v1623 = vld [vmem:[#allocation2 + $0x8] sm:$0xf]
    %v1624 = vld [vmem:[#allocation2 + $0x10] sm:$0xf]
    %v1625 = vld [vmem:[#allocation2 + $0x18] sm:$0xf]
    %v1626 = vld [vmem:[#allocation2 + $0x30] sm:$0xf]
    %v1627 = vld [vmem:[#allocation2 + $0x38] sm:$0xf]
    %v1628 = vld [vmem:[#allocation2 + $0x40] sm:$0xf]
    %v1629 = vld [vmem:[#allocation2 + $0x48] sm:$0xf]
    %v1630 = vld [vmem:[#allocation2 + $0x1] sm:$0xf]
    %v1631 = vld [vmem:[#allocation2 + $0x9] sm:$0xf]
    %v1632 = vld [vmem:[#allocation2 + $0x11] sm:$0xf]
    %v1633 = vld [vmem:[#allocation2 + $0x19] sm:$0xf]
    %v1634 = vld [vmem:[#allocation2 + $0x31] sm:$0xf]
    %v1635 = vld [vmem:[#allocation2 + $0x39] sm:$0xf]
    %v1636 = vld [vmem:[#allocation2 + $0x41] sm:$0xf]
    %v1637 = vld [vmem:[#allocation2 + $0x49] sm:$0xf]
    %v1638 = vld [vmem:[#allocation2 + $0x2] sm:$0xf]
    %v1639 = vld [vmem:[#allocation2 + $0xa] sm:$0xf]
    %v1640 = vld [vmem:[#allocation2 + $0x12] sm:$0xf]
    %v1641 = vld [vmem:[#allocation2 + $0x1a] sm:$0xf]
    %v1642 = vld [vmem:[#allocation2 + $0x32] sm:$0xf]
    %v1643 = vld [vmem:[#allocation2 + $0x3a] sm:$0xf]
    %v1644 = vld [vmem:[#allocation2 + $0x42] sm:$0xf]
    %v1645 = vld [vmem:[#allocation2 + $0x4a] sm:$0xf]
    %v1646 = vld [vmem:[%s1612] sm:$0xf]
    %v1647 = vld [vmem:[%s1612 + $0x8] sm:$0xf]
    %v1648 = vld [vmem:[%s1612 + $0x10] sm:$0xf]
    %v1649 = vld [vmem:[%s1612 + $0x18] sm:$0xf]
    %v1650 = vld [vmem:[%s1612 + $0x30] sm:$0xf]
    %v1651 = vld [vmem:[%s1612 + $0x38] sm:$0xf]
    %v1652 = vld [vmem:[%s1612 + $0x40] sm:$0xf]
    %v1653 = vld [vmem:[%s1612 + $0x48] sm:$0xf]
    %v1654 = vld [vmem:[%s1612 + $0x1] sm:$0xf]
    %v1655 = vld [vmem:[%s1612 + $0x9] sm:$0xf]
    %v1656 = vld [vmem:[%s1612 + $0x11] sm:$0xf]
    %v1657 = vld [vmem:[%s1612 + $0x19] sm:$0xf]
    %v1658 = vld [vmem:[%s1612 + $0x31] sm:$0xf]
    %v1659 = vld [vmem:[%s1612 + $0x39] sm:$0xf]
    %v1660 = vld [vmem:[%s1612 + $0x41] sm:$0xf]
    %v1661 = vld [vmem:[%s1612 + $0x49] sm:$0xf]
    %v1662 = vld [vmem:[%s1612 + $0x2] sm:$0xf]
    %v1663 = vld [vmem:[%s1612 + $0xa] sm:$0xf]
    %v1664 = vld [vmem:[%s1612 + $0x12] sm:$0xf]
    %v1665 = vld [vmem:[%s1612 + $0x1a] sm:$0xf]
    %v1666 = vld [vmem:[%s1612 + $0x32] sm:$0xf]
    %v1667 = vld [vmem:[%s1612 + $0x3a] sm:$0xf]
    %v1668 = vld [vmem:[%s1612 + $0x42] sm:$0xf]
    %v1669 = vld [vmem:[%s1612 + $0x4a] sm:$0xf]
    %s1670 = scalar_lea.vmem [#allocation2], 16
    %v1671 = vld [vmem:[%s1670] sm:$0xf]
    %v1672 = vld [vmem:[%s1670 + $0x8] sm:$0xf]
    %v1673 = vld [vmem:[%s1670 + $0x10] sm:$0xf]
    %v1674 = vld [vmem:[%s1670 + $0x18] sm:$0xf]
    %v1675 = vld [vmem:[%s1670 + $0x30] sm:$0xf]
    %v1676 = vld [vmem:[%s1670 + $0x38] sm:$0xf]
    %v1677 = vld [vmem:[%s1670 + $0x40] sm:$0xf]
    %v1678 = vld [vmem:[%s1670 + $0x48] sm:$0xf]
    %v1679 = vld [vmem:[%s1670 + $0x1] sm:$0xf]
    %v1680 = vld [vmem:[%s1670 + $0x9] sm:$0xf]
    %v1681 = vld [vmem:[%s1670 + $0x11] sm:$0xf]
    %v1682 = vld [vmem:[%s1670 + $0x19] sm:$0xf]
    %v1683 = vld [vmem:[%s1670 + $0x31] sm:$0xf]
    %v1684 = vld [vmem:[%s1670 + $0x39] sm:$0xf]
    %v1685 = vld [vmem:[%s1670 + $0x41] sm:$0xf]
    %v1686 = vld [vmem:[%s1670 + $0x49] sm:$0xf]
    %v1687 = vld [vmem:[%s1670 + $0x2] sm:$0xf]
    %v1688 = vld [vmem:[%s1670 + $0xa] sm:$0xf]
    %v1689 = vld [vmem:[%s1670 + $0x12] sm:$0xf]
    %v1690 = vld [vmem:[%s1670 + $0x1a] sm:$0xf]
    %v1691 = vld [vmem:[%s1670 + $0x32] sm:$0xf]
    %v1692 = vld [vmem:[%s1670 + $0x3a] sm:$0xf]
    %v1693 = vld [vmem:[%s1670 + $0x42] sm:$0xf]
    %v1694 = vld [vmem:[%s1670 + $0x4a] sm:$0xf]
    %v1703 = vcombine.low %v1622, %v1623
    %v1704 = vcombine.low %v1624, %v1625
    %v1705 = vcombine.low %v1626, %v1627
    %v1706 = vcombine.low %v1628, %v1629
    %v1719 = vcombine.low %v1630, %v1631
    %v1720 = vcombine.low %v1632, %v1633
    %v1721 = vcombine.low %v1634, %v1635
    %v1722 = vcombine.low %v1636, %v1637
    %1723 = vrot.lane.b32.xlu0 %v1719, 16
    %v1724 = vpop.permute.xlu0 %1723
    %1725 = vrot.lane.b32.xlu0 %v1720, 16
    %v1726 = vpop.permute.xlu0 %1725
    %1727 = vrot.lane.b32.xlu0 %v1721, 16
    %v1728 = vpop.permute.xlu0 %1727
    %1729 = vrot.lane.b32.xlu0 %v1722, 16
    %v1730 = vpop.permute.xlu0 %1729
    %v1743 = vcombine.low %v1638, %v1639
    %v1744 = vcombine.low %v1640, %v1641
    %v1745 = vcombine.low %v1642, %v1643
    %v1746 = vcombine.low %v1644, %v1645
    %1747 = vrot.lane.b32.xlu0 %v1743, 32
    %v1748 = vpop.permute.xlu0 %1747
    %1749 = vrot.lane.b32.xlu0 %v1744, 32
    %v1750 = vpop.permute.xlu0 %1749
    %1751 = vrot.lane.b32.xlu0 %v1745, 32
    %v1752 = vpop.permute.xlu0 %1751
    %1753 = vrot.lane.b32.xlu0 %v1746, 32
    %v1754 = vpop.permute.xlu0 %1753
    %v1767 = vcombine.low %v1646, %v1647
    %v1768 = vcombine.low %v1648, %v1649
    %v1769 = vcombine.low %v1650, %v1651
    %v1770 = vcombine.low %v1652, %v1653
    %1771 = vrot.lane.b32.xlu0 %v1767, 48
    %v1772 = vpop.permute.xlu0 %1771
    %1773 = vrot.lane.b32.xlu0 %v1768, 48
    %v1774 = vpop.permute.xlu0 %1773
    %1775 = vrot.lane.b32.xlu0 %v1769, 48
    %v1776 = vpop.permute.xlu0 %1775
    %1777 = vrot.lane.b32.xlu0 %v1770, 48
    %v1778 = vpop.permute.xlu0 %1777
    %v1791 = vcombine.low %v1654, %v1655
    %v1792 = vcombine.low %v1656, %v1657
    %v1793 = vcombine.low %v1658, %v1659
    %v1794 = vcombine.low %v1660, %v1661
    %1795 = vrot.lane.b32.xlu0 %v1791, 64
    %v1796 = vpop.permute.xlu0 %1795
    %1797 = vrot.lane.b32.xlu0 %v1792, 64
    %v1798 = vpop.permute.xlu0 %1797
    %1799 = vrot.lane.b32.xlu0 %v1793, 64
    %v1800 = vpop.permute.xlu0 %1799
    %1801 = vrot.lane.b32.xlu0 %v1794, 64
    %v1802 = vpop.permute.xlu0 %1801
    %v1815 = vcombine.low %v1662, %v1663
    %v1816 = vcombine.low %v1664, %v1665
    %v1817 = vcombine.low %v1666, %v1667
    %v1818 = vcombine.low %v1668, %v1669
    %1819 = vrot.lane.b32.xlu0 %v1815, 80
    %v1820 = vpop.permute.xlu0 %1819
    %1821 = vrot.lane.b32.xlu0 %v1816, 80
    %v1822 = vpop.permute.xlu0 %1821
    %1823 = vrot.lane.b32.xlu0 %v1817, 80
    %v1824 = vpop.permute.xlu0 %1823
    %1825 = vrot.lane.b32.xlu0 %v1818, 80
    %v1826 = vpop.permute.xlu0 %1825
    %v1839 = vcombine.low %v1671, %v1672
    %v1840 = vcombine.low %v1673, %v1674
    %v1841 = vcombine.low %v1675, %v1676
    %v1842 = vcombine.low %v1677, %v1678
    %1843 = vrot.lane.b32.xlu0 %v1839, 96
    %v1844 = vpop.permute.xlu0 %1843
    %1845 = vrot.lane.b32.xlu0 %v1840, 96
    %v1846 = vpop.permute.xlu0 %1845
    %1847 = vrot.lane.b32.xlu0 %v1841, 96
    %v1848 = vpop.permute.xlu0 %1847
    %1849 = vrot.lane.b32.xlu0 %v1842, 96
    %v1850 = vpop.permute.xlu0 %1849
    %v1863 = vcombine.low %v1679, %v1680
    %v1864 = vcombine.low %v1681, %v1682
    %v1865 = vcombine.low %v1683, %v1684
    %v1866 = vcombine.low %v1685, %v1686
    %1867 = vrot.lane.b32.xlu0 %v1863, 112
    %v1868 = vpop.permute.xlu0 %1867
    %1869 = vrot.lane.b32.xlu0 %v1864, 112
    %v1870 = vpop.permute.xlu0 %1869
    %1871 = vrot.lane.b32.xlu0 %v1865, 112
    %v1872 = vpop.permute.xlu0 %1871
    %1873 = vrot.lane.b32.xlu0 %v1866, 112
    %v1874 = vpop.permute.xlu0 %1873
    %v1887 = vcombine.low %v1687, %v1688
    %v1888 = vcombine.low %v1689, %v1690
    %v1889 = vcombine.low %v1691, %v1692
    %v1890 = vcombine.low %v1693, %v1694
    %v1891 = vsel %vm610, %v1703, %v1724
    %v1892 = vsel %vm610, %v1704, %v1726
    %v1893 = vsel %vm610, %v1705, %v1728
    %v1894 = vsel %vm610, %v1706, %v1730
    %v1895 = vsel %vm627, %v1891, %v1748
    %v1896 = vsel %vm627, %v1892, %v1750
    %v1897 = vsel %vm627, %v1893, %v1752
    %v1898 = vsel %vm627, %v1894, %v1754
    %v1899 = vsel %vm644, %v1895, %v1772
    %v1900 = vsel %vm644, %v1896, %v1774
    %v1901 = vsel %vm644, %v1897, %v1776
    %v1902 = vsel %vm644, %v1898, %v1778
    %v1903 = vsel %vm661, %v1899, %v1796
    %v1904 = vsel %vm661, %v1900, %v1798
    %v1905 = vsel %vm661, %v1901, %v1800
    %v1906 = vsel %vm661, %v1902, %v1802
    %v1907 = vsel %vm678, %v1903, %v1820
    %v1908 = vsel %vm678, %v1904, %v1822
    %v1909 = vsel %vm678, %v1905, %v1824
    %v1910 = vsel %vm678, %v1906, %v1826
    %v1911 = vsel %vm695, %v1907, %v1844
    %v1912 = vsel %vm695, %v1908, %v1846
    %v1913 = vsel %vm695, %v1909, %v1848
    %v1914 = vsel %vm695, %v1910, %v1850
    %v1915 = vsel %vm712, %v1911, %v1868
    %v1916 = vsel %vm712, %v1912, %v1870
    %v1917 = vsel %vm712, %v1913, %v1872
    %v1918 = vsel %vm712, %v1914, %v1874
    %s1919 = scalar_lea.vmem %s1, 144
    %v1920 = vld [vmem:[%s1919] sm:$0xff]
    %v1921 = vld [vmem:[%s1919 + $0x8] sm:$0xff]
    %v1922 = vld [vmem:[%s1919 + $0x10] sm:$0xff]
    %v1923 = vld [vmem:[%s1919 + $0x18] sm:$0xff]
    %v1924 = vld [vmem:[%s1919 + $0x20] sm:$0xff]
    %v1925 = vld [vmem:[%s1919 + $0x28] sm:$0xff]
    %v1926 = vld [vmem:[%s1919 + $0x30] sm:$0xff]
    %v1927 = vld [vmem:[%s1919 + $0x38] sm:$0xff]
    %v1928 = vld [vmem:[%s1919 + $0x40] sm:$0xff]
    %v1929 = vld [vmem:[%s1919 + $0x48] sm:$0xff]
    %v1930 = vld [vmem:[%s1919 + $0x50] sm:$0xff]
    %v1931 = vld [vmem:[%s1919 + $0x58] sm:$0xff]
    %v1932 = vld [vmem:[%s1919 + $0x60] sm:$0xff]
    %v1933 = vld [vmem:[%s1919 + $0x68] sm:$0xff]
    %v1934 = vld [vmem:[%s1919 + $0x70] sm:$0xff]
    %v1935 = vld [vmem:[%s1919 + $0x78] sm:$0xff]
    %v1936 = vld [vmem:[%s1919 + $0x80] sm:$0xff]
    %v1937 = vld [vmem:[%s1919 + $0x88] sm:$0xff]
    %v1938 = vsel %vm610, %v1887, 0
    %v1940 = vsel %vm610, %v1888, 0
    %v1942 = vsel %vm610, %v1889, 0
    %v1944 = vsel %vm610, %v1890, 0
    %1946 = vmatprep.subr.mxu0 0.0
    %1947 = vmatpush1.msra.mxu0 %v1920
    %1948 = vmatprep.subr.mxu0 0.0
    %1949 = vmatpush1.msra.mxu0 %v1921
    %1950 = vmatprep.subr.mxu0 0.0
    %1951 = vmatpush1.msra.mxu0 %v1922
    %1952 = vmatprep.subr.mxu0 0.0
    %1953 = vmatpush1.msra.mxu0 %v1923
    %1954 = vmatprep.subr.mxu0 0.0
    %1955 = vmatpush1.msra.mxu0 %v1924
    %1956 = vmatprep.subr.mxu0 0.0
    %1957 = vmatpush1.msra.mxu0 %v1925
    %1958 = vmatprep.subr.mxu0 0.0
    %1959 = vmatpush1.msra.mxu0 %v1926
    %1960 = vmatprep.subr.mxu0 0.0
    %1961 = vmatpush1.msra.mxu0 %v1927
    %1962 = vmatprep.subr.mxu0 0.0
    %1963 = vmatpush1.msra.mxu0 %v1928
    %1964 = vmatprep.subr.mxu0 0.0
    %1965 = vmatpush1.msra.mxu0 %v1929
    %1966 = vmatprep.subr.mxu0 0.0
    %1967 = vmatpush1.msra.mxu0 %v1930
    %1968 = vmatprep.subr.mxu0 0.0
    %1969 = vmatpush1.msra.mxu0 %v1931
    %1970 = vmatprep.subr.mxu0 0.0
    %1971 = vmatpush1.msra.mxu0 %v1932
    %1972 = vmatprep.subr.mxu0 0.0
    %1973 = vmatpush1.msra.mxu0 %v1933
    %1974 = vmatprep.subr.mxu0 0.0
    %1975 = vmatpush1.msra.mxu0 %v1934
    %1976 = vmatprep.subr.mxu0 0.0
    %1977 = vmatpush1.msra.mxu0 %v1935
    %1978 = vmatprep.subr.mxu0 0.0
    %1979 = vmatpush1.msra.mxu0 %v1936
    %1980 = vmatprep.subr.mxu0 0.0
    %1981 = vmatpush1.msra.mxu0 %v1937
    %1982 = vmatprep.subr.mxu0 0.0
    %1983 = vmatpush1.msra.mxu0 0.0
    %1984 = vmatprep.subr.mxu0 0.0
    %1985 = vmatpush1.msra.mxu0 0.0
    %1986 = vmatprep.subr.mxu0 0.0
    %1987 = vmatpush1.msra.mxu0 0.0
    %1988 = vmatprep.subr.mxu0 0.0
    %1989 = vmatpush1.msra.mxu0 0.0
    %1990 = vmatprep.subr.mxu0 0.0
    %1991 = vmatpush1.msra.mxu0 0.0
    %1992 = vmatprep.subr.mxu0 0.0
    %1993 = vmatpush1.msra.mxu0 0.0
    %1994 = vmatprep.subr.mxu0 0.0
    %1995 = vmatpush1.msra.mxu0 0.0
    %1996 = vmatprep.subr.mxu0 0.0
    %1997 = vmatpush1.msra.mxu0 0.0
    %1998 = vmatprep.subr.mxu0 0.0
    %1999 = vmatpush1.msra.mxu0 0.0
    %2000 = vmatprep.subr.mxu0 0.0
    %2001 = vmatpush1.msra.mxu0 0.0
    %2002 = vmatprep.subr.mxu0 0.0
    %2003 = vmatpush1.msra.mxu0 0.0
    %2004 = vmatprep.subr.mxu0 0.0
    %2005 = vmatpush1.msra.mxu0 0.0
    %2006 = vmatprep.subr.mxu0 0.0
    %2007 = vmatpush1.msra.mxu0 0.0
    %2008 = vmatprep.subr.mxu0 0.0
    %2009 = vmatpush1.msra.mxu0 0.0
    %2010 = vmatprep.mubr.f32.mxu0 %v1938
    %2011 = vmatmul.mubr.f32.gmra.mrb[0].mxu0 %v1915
    %v2012 = vpop.f32.mrb[0].mxu0
    %v2013 = vadd.f32 0.0, %v2012
    %v2014 = vpop.f32.mrb[0].mxu0
    %2015 = vmatprep.mubr.f32.mxu0 %v1940
    %2016 = vmatmul.mubr.f32.gmra.mrb[0].mxu0 %v1916
    %v2017 = vpop.f32.mrb[0].mxu0
    %v2018 = vadd.f32 0.0, %v2017
    %v2019 = vpop.f32.mrb[0].mxu0
    %2020 = vmatprep.mubr.f32.mxu0 %v1942
    %2021 = vmatmul.mubr.f32.gmra.mrb[0].mxu0 %v1917
    %v2022 = vpop.f32.mrb[0].mxu0
    %v2023 = vadd.f32 0.0, %v2022
    %v2024 = vpop.f32.mrb[0].mxu0
    %2025 = vmatprep.mubr.f32.mxu0 %v1944
    %2026 = vmatmul.mubr.f32.gmra.mrb[0].mxu0 %v1918
    %v2027 = vpop.f32.mrb[0].mxu0
    %v2028 = vadd.f32 0.0, %v2027
    %v2029 = vpop.f32.mrb[0].mxu0
    %2030 = vdwg.mxu0
    %v2031 = vsel %vm610, %v2013, 0.0
    %v2032 = vsel %vm610, %v2018, 0.0
    %v2033 = vadd.f32 %v2031, %v2032
    %v2034 = vsel %vm610, %v2023, 0.0
    %v2035 = vadd.f32 %v2033, %v2034
    %v2036 = vsel %vm610, %v2028, 0.0
    %v2037 = vadd.f32 %v2035, %v2036
    %v2038 = vrot.slane %v2037, 4
    %v2039 = vadd.f32 %v2037, %v2038
    %v2040 = vrot.slane %v2039, 2
    %v2041 = vadd.f32 %v2039, %v2040
    %v2042 = vrot.slane %v2041, 1
    %v2043 = vadd.f32 %v2041, %v2042
    %v2044 = vrcp.pop 32.0
    %v2045 = vmul.f32 %v2043, %v2044
    %v2046 = vsub.f32 %v2013, %v2045
    %v2047 = vsub.f32 %v2018, %v2045
    %v2048 = vsub.f32 %v2023, %v2045
    %v2049 = vsub.f32 %v2028, %v2045
    %v2050 = vmul.f32 %v2046, %v2046
    %v2051 = vmul.f32 %v2047, %v2047
    %v2052 = vmul.f32 %v2048, %v2048
    %v2053 = vmul.f32 %v2049, %v2049
    %v2054 = vsel %vm610, %v2050, 0.0
    %v2055 = vsel %vm610, %v2051, 0.0
    %v2056 = vadd.f32 %v2054, %v2055
    %v2057 = vsel %vm610, %v2052, 0.0
    %v2058 = vadd.f32 %v2056, %v2057
    %v2059 = vsel %vm610, %v2053, 0.0
    %v2060 = vadd.f32 %v2058, %v2059
    %v2061 = vrot.slane %v2060, 4
    %v2062 = vadd.f32 %v2060, %v2061
    %v2063 = vrot.slane %v2062, 2
    %v2064 = vadd.f32 %v2062, %v2063
    %v2065 = vrot.slane %v2064, 1
    %v2066 = vadd.f32 %v2064, %v2065
    %v2067 = vmul.f32 %v2066, %v2044
    %v2068 = vadd.f32 %v2067, 1e-05
    %v2069 = vrsqrt.pop %v2068
    %v2070 = vmul.f32 %v15, %v2069
    %v2071 = vlaneseq
    %v2072 = vshrl.u32 %v2071, 7
    %v2073 = vsub.s32 2, %v2072
    %v2074 = vrot.slane %v2070, %v2073
    %v2075 = vmul.f32 %v2046, %v2074
    %v2076 = vmul.f32 %v2047, %v2074
    %v2077 = vmul.f32 %v2048, %v2074
    %v2078 = vmul.f32 %v2049, %v2074
    %v2079 = vlaneseq
    %v2080 = vshrl.u32 %v2079, 7
    %v2081 = vsub.s32 3, %v2080
    %v2082 = vrot.slane %v15, %v2081
    %v2083 = vadd.f32 %v2075, %v2082
    %v2084 = vadd.f32 %v2076, %v2082
    %v2085 = vadd.f32 %v2077, %v2082
    %v2086 = vadd.f32 %v2078, %v2082
    %v2087 = vmax.f32 %v2083, 0.0
    %v2088 = vmax.f32 %v2084, 0.0
    %v2089 = vmax.f32 %v2085, 0.0
    %v2090 = vmax.f32 %v2086, 0.0
    %v2095 = vcombine.high %v2087, %v2087
    %v2096 = vcombine.high %v2088, %v2088
    %v2097 = vcombine.high %v2089, %v2089
    %v2098 = vcombine.high %v2090, %v2090
    %v2103 = vsel %vm1613, %v2087, 0.0
    %v2104 = vsel %vm1613, %v2095, 0.0
    %v2105 = vadd.f32 %v2103, %v2104
    %v2106 = vsel %vm1613, %v2088, 0.0
    %v2107 = vsel %vm1613, %v2096, 0.0
    %v2108 = vadd.f32 %v2106, %v2107
    %v2109 = vsel %vm1613, %v2089, 0.0
    %v2110 = vsel %vm1613, %v2097, 0.0
    %v2111 = vadd.f32 %v2109, %v2110
    %v2112 = vsel %vm1613, %v2090, 0.0
    %v2113 = vsel %vm1613, %v2098, 0.0
    %v2114 = vadd.f32 %v2112, %v2113
    %v2115 = vrcp.pop 2.0
    %v2116 = vmul.f32 %v2105, %v2115
    %v2117 = vmul.f32 %v2108, %v2115
    %v2118 = vmul.f32 %v2111, %v2115
    %v2119 = vmul.f32 %v2114, %v2115
    %v2125 = vunpack.c.l.s4 1983009808
    %v2126 = vunpack.c.0.s8 %v2125
    %v2127 = vlaneseq
    %v2128 = vshrl.u32 %v2127, 7
    %v2129 = vsub.s32 %v2126, %v2128
    %v2130 = vrot.slane %v2116, %v2129
    %v2131 = vcombine.high %v2130, %v2130
    %v2133 = vunpack.c.l.s4 1983009808
    %v2134 = vunpack.c.0.s8 %v2133
    %v2135 = vlaneseq
    %v2136 = vshrl.u32 %v2135, 7
    %v2137 = vsub.s32 %v2134, %v2136
    %v2138 = vrot.slane %v2117, %v2137
    %v2139 = vcombine.high %v2138, %v2138
    %v2141 = vunpack.c.l.s4 1983009808
    %v2142 = vunpack.c.0.s8 %v2141
    %v2143 = vlaneseq
    %v2144 = vshrl.u32 %v2143, 7
    %v2145 = vsub.s32 %v2142, %v2144
    %v2146 = vrot.slane %v2118, %v2145
    %v2147 = vcombine.high %v2146, %v2146
    %v2149 = vunpack.c.l.s4 1983009808
    %v2150 = vunpack.c.0.s8 %v2149
    %v2151 = vlaneseq
    %v2152 = vshrl.u32 %v2151, 7
    %v2153 = vsub.s32 %v2150, %v2152
    %v2154 = vrot.slane %v2119, %v2153
    %v2155 = vcombine.high %v2154, %v2154
    %v2164 = vsel %vm1308, %v2130, 0.0
    %v2165 = vrot.slane %v2164, 4
    %v2166 = vadd.f32 %v2164, %v2165
    %v2167 = vrot.slane %v2166, 2
    %v2168 = vadd.f32 %v2166, %v2167
    %v2169 = vrot.slane %v2168, 1
    %v2170 = vadd.f32 %v2168, %v2169
    %v2171 = vsel %vm1308, %v2131, 0.0
    %v2172 = vrot.slane %v2171, 4
    %v2173 = vadd.f32 %v2171, %v2172
    %v2174 = vrot.slane %v2173, 2
    %v2175 = vadd.f32 %v2173, %v2174
    %v2176 = vrot.slane %v2175, 1
    %v2177 = vadd.f32 %v2175, %v2176
    %v2178 = vsel %vm1308, %v2138, 0.0
    %v2179 = vrot.slane %v2178, 4
    %v2180 = vadd.f32 %v2178, %v2179
    %v2181 = vrot.slane %v2180, 2
    %v2182 = vadd.f32 %v2180, %v2181
    %v2183 = vrot.slane %v2182, 1
    %v2184 = vadd.f32 %v2182, %v2183
    %v2185 = vsel %vm1308, %v2139, 0.0
    %v2186 = vrot.slane %v2185, 4
    %v2187 = vadd.f32 %v2185, %v2186
    %v2188 = vrot.slane %v2187, 2
    %v2189 = vadd.f32 %v2187, %v2188
    %v2190 = vrot.slane %v2189, 1
    %v2191 = vadd.f32 %v2189, %v2190
    %v2192 = vsel %vm1308, %v2146, 0.0
    %v2193 = vrot.slane %v2192, 4
    %v2194 = vadd.f32 %v2192, %v2193
    %v2195 = vrot.slane %v2194, 2
    %v2196 = vadd.f32 %v2194, %v2195
    %v2197 = vrot.slane %v2196, 1
    %v2198 = vadd.f32 %v2196, %v2197
    %v2199 = vsel %vm1308, %v2147, 0.0
    %v2200 = vrot.slane %v2199, 4
    %v2201 = vadd.f32 %v2199, %v2200
    %v2202 = vrot.slane %v2201, 2
    %v2203 = vadd.f32 %v2201, %v2202
    %v2204 = vrot.slane %v2203, 1
    %v2205 = vadd.f32 %v2203, %v2204
    %v2206 = vsel %vm1308, %v2154, 0.0
    %v2207 = vrot.slane %v2206, 4
    %v2208 = vadd.f32 %v2206, %v2207
    %v2209 = vrot.slane %v2208, 2
    %v2210 = vadd.f32 %v2208, %v2209
    %v2211 = vrot.slane %v2210, 1
    %v2212 = vadd.f32 %v2210, %v2211
    %v2213 = vsel %vm1308, %v2155, 0.0
    %v2214 = vrot.slane %v2213, 4
    %v2215 = vadd.f32 %v2213, %v2214
    %v2216 = vrot.slane %v2215, 2
    %v2217 = vadd.f32 %v2215, %v2216
    %v2218 = vrot.slane %v2217, 1
    %v2219 = vadd.f32 %v2217, %v2218
    %v2220 = vmul.f32 %v2170, %v2115
    %v2221 = vmul.f32 %v2177, %v2115
    %v2222 = vmul.f32 %v2184, %v2115
    %v2223 = vmul.f32 %v2191, %v2115
    %v2224 = vmul.f32 %v2198, %v2115
    %v2225 = vmul.f32 %v2205, %v2115
    %v2226 = vmul.f32 %v2212, %v2115
    %v2227 = vmul.f32 %v2219, %v2115
    %v2236 = vsel %vm1577, %v2221, %v2220
    %v2237 = vsel %vm1579, %v2222, %v2236
    %v2238 = vsel %vm1581, %v2223, %v2237
    %vm2239 = vcmask 1044484
    %v2240 = vsel %vm2239, %v2224, %v2238
    %vm2241 = vcmask 1045509
    %v2242 = vsel %vm2241, %v2225, %v2240
    %vm2243 = vcmask 1046534
    %v2244 = vsel %vm2243, %v2226, %v2242
    %vm2245 = vcmask 1047559
    %v2246 = vsel %vm2245, %v2227, %v2244
    %2248 = vst.msk [vmem:[#allocation3] sm:$0xff] %vm610, %v2246
    // Predicated region
    $region14: #{shallow_net_forward.1} parent=1 // pred_check
      _
    $region15: #{shallow_net_forward.1} parent=1 // pred_check_branch
      %2250 = sbr.rel (0) target = $region17
    $region16: #{shallow_net_forward.1} parent=1 // pred_region
      %s2252 = ssub.s32 128, 128
      %2253 = vsyncadd [#allocation4], %s2252
      %s2255 = sshll.u32 [#allocation3], 4
      %s2256 = int_to_ptr.vmem [resolvable:$true] %s2255
      %2258 = dma.vmem_to_hbm [thread:$0]  %s2256, 128, %s3, [#allocation4]
    $region17: #{shallow_net_forward.1} parent=1 // pred_fallthru
      _
    // Predicated region
    $region18: #{shallow_net_forward.1} parent=1 // pred_check
      _
    $region19: #{shallow_net_forward.1} parent=1 // pred_check_branch
      %2260 = sbr.rel (0) target = $region21
    $region20: #{shallow_net_forward.1} parent=1 // pred_region
      %2261 = dma.done [#allocation4], 128
    $region21: #{shallow_net_forward.1} parent=1 // pred_fallthru
      _
    %2262 = vsyncpa [#allocation4], 1

</llo_original>
